<compile_context>
chip_gen: v7x
topology: tpu7x:2x2x1
jax: 0.10.0
libtpu: 0.0.40
codegen_flags: <defaults>
</compile_context>

<pallas_src>
import jax
import jax.numpy as jnp
from jax.experimental import pallas as pl
from jax.experimental.pallas import tpu as pltpu

# ---------------------------------------------------------------------------
# model / example dimensions (module defaults: input_size=102, num_classes=8)
# ---------------------------------------------------------------------------
B = 2            # batch
T = 16           # sequence length (time)
D_IN = 102       # input feature size (module default)
D_PAD = 128      # input features padded to a full lane width
C1 = 128         # conv1 out channels
C2 = 256         # conv2 out channels
NC = 8           # num_classes
NC_PAD = 128     # logits padded to a full lane width (lane-dense store)
K = 5            # conv kernel size
PAD = 2          # conv padding
BN_EPS = 1e-5

# Extended conv1 output range: T valid rows + 2*PAD halo rows on each side.
# The halo rows get masked to zero and become conv2's zero padding.
T_EXT = T + 4 * PAD            # 24  (multiple of 8 -> clean reshapes)
T_SRC = T_EXT + K - 1          # 28  (rows of the padded input slab)
X_PAD = 3 * PAD                # 6   (time zero-padding applied in the wrapper)


# ---------------------------------------------------------------------------
# kernel
# ---------------------------------------------------------------------------
def _cnn_backbone_kernel(x_ref,      # (bt, T_SRC, D_PAD)  bf16, zero-padded input
                         w1_ref,     # (K*D_PAD, C1)       bf16, BN1 scale folded
                         b1_ref,     # (1, C1)             f32, conv1+BN1 bias
                         w2_ref,     # (K*C1, C2)          bf16, BN2 scale folded
                         b2_ref,     # (1, C2)             f32, conv2+BN2 bias
                         wfc_ref,    # (C2, NC_PAD)        bf16, 1/T pool folded
                         bfc_ref,    # (1, NC_PAD)         f32
                         out_ref):   # (bt, NC_PAD)        f32
    bt = x_ref.shape[0]
    x = x_ref[...]                                            # (bt, T_SRC, D_PAD) bf16

    # ---- Conv1d #1 (k=5, pad=2) as ONE im2col matmul over the extended range.
    # Input is already bf16, so the 5x-duplicated slab is built in bf16.
    lhs1 = jnp.concatenate([x[:, k:k + T_EXT, :] for k in range(K)], axis=-1)
    lhs1 = lhs1.reshape(bt * T_EXT, K * D_PAD)
    h1 = jnp.dot(lhs1, w1_ref[...], preferred_element_type=jnp.float32)
    h1 = jnp.maximum(h1 + b1_ref[...], 0.0)                   # BN1 (folded) + ReLU, f32
    h1 = h1.reshape(bt, T_EXT, C1)

    # Zero the halo rows -> this realises conv2's zero padding exactly
    # (valid conv1 outputs live at rows [2*PAD, 2*PAD + T)).
    # Small (1, T_EXT, 1) iota; the where broadcasts it over batch & channels.
    t_idx = jax.lax.broadcasted_iota(jnp.int32, (1, T_EXT, 1), 1)
    valid = (t_idx >= 2 * PAD) & (t_idx < 2 * PAD + T)
    h1 = jnp.where(valid, h1, 0.0).astype(jnp.bfloat16)       # cast BEFORE im2col dup

    # ---- Conv1d #2 (k=5, pad=2) as ONE im2col matmul (bf16 slab)
    lhs2 = jnp.concatenate([h1[:, PAD + k:PAD + k + T, :] for k in range(K)],
                           axis=-1)
    lhs2 = lhs2.reshape(bt * T, K * C1)
    h2 = jnp.dot(lhs2, w2_ref[...], preferred_element_type=jnp.float32)
    h2 = jnp.maximum(h2 + b2_ref[...], 0.0)                   # BN2 (folded) + ReLU, f32

    # ---- AdaptiveAvgPool1d(1) (1/T folded into wfc) + Linear (NC padded to 128)
    pooled = jnp.sum(h2.reshape(bt, T, C2), axis=1)           # (bt, C2) f32
    logits = jnp.dot(pooled.astype(jnp.bfloat16), wfc_ref[...],
                     preferred_element_type=jnp.float32) + bfc_ref[...]
    out_ref[...] = logits.astype(out_ref.dtype)               # lane-dense store


# ---------------------------------------------------------------------------
# parameter / input preparation (done ONCE per model, not per call)
# ---------------------------------------------------------------------------
def make_params(key):
    """Deterministic synthetic parameters in PyTorch layout."""
    ks = jax.random.split(key, 14)
    w1 = 0.05 * jax.random.normal(ks[0], (C1, D_IN, K), jnp.float32)
    cb1 = 0.05 * jax.random.normal(ks[1], (C1,), jnp.float32)
    g1 = 1.0 + 0.1 * jax.random.normal(ks[2], (C1,), jnp.float32)
    be1 = 0.1 * jax.random.normal(ks[3], (C1,), jnp.float32)
    m1 = 0.1 * jax.random.normal(ks[4], (C1,), jnp.float32)
    v1 = jnp.abs(1.0 + 0.1 * jax.random.normal(ks[5], (C1,), jnp.float32))
    w2 = 0.05 * jax.random.normal(ks[6], (C2, C1, K), jnp.float32)
    cb2 = 0.05 * jax.random.normal(ks[7], (C2,), jnp.float32)
    g2 = 1.0 + 0.1 * jax.random.normal(ks[8], (C2,), jnp.float32)
    be2 = 0.1 * jax.random.normal(ks[9], (C2,), jnp.float32)
    m2 = 0.1 * jax.random.normal(ks[10], (C2,), jnp.float32)
    v2 = jnp.abs(1.0 + 0.1 * jax.random.normal(ks[11], (C2,), jnp.float32))
    wfc = 0.05 * jax.random.normal(ks[12], (NC, C2), jnp.float32)
    bfc = 0.05 * jax.random.normal(ks[13], (NC,), jnp.float32)
    return (w1, cb1, g1, be1, m1, v1, w2, cb2, g2, be2, m2, v2, wfc, bfc)


def prepare_params(raw):
    """Fold BN (eval), conv bias and pool 1/T; im2col-reshape; pad; cast bf16.

    Call this ONCE per model (make_cnn_backbone does so) and cache the result.
    """
    (w1, cb1, g1, be1, m1, v1, w2, cb2, g2, be2, m2, v2, wfc, bfc) = raw
    s1 = g1 / jnp.sqrt(v1 + BN_EPS)                            # (C1,)
    s2 = g2 / jnp.sqrt(v2 + BN_EPS)                            # (C2,)

    # conv1: (C1, D_IN, K) -> (K, D_IN, C1), fold BN scale, pad D_IN -> D_PAD,
    # flatten taps for im2col.
    w1c = jnp.transpose(w1, (2, 1, 0)) * s1[None, None, :]
    w1c = jnp.pad(w1c, ((0, 0), (0, D_PAD - D_IN), (0, 0)))
    w1c = w1c.reshape(K * D_PAD, C1).astype(jnp.bfloat16)
    b1 = (s1 * cb1 + be1 - s1 * m1).reshape(1, C1).astype(jnp.float32)

    # conv2: (C2, C1, K) -> (K*C1, C2)
    w2c = (jnp.transpose(w2, (2, 1, 0)) * s2[None, None, :])
    w2c = w2c.reshape(K * C1, C2).astype(jnp.bfloat16)
    b2 = (s2 * cb2 + be2 - s2 * m2).reshape(1, C2).astype(jnp.float32)

    # fc: (NC, C2) -> (C2, NC), fold AdaptiveAvgPool's 1/T, pad NC -> NC_PAD.
    wfcp = jnp.pad(wfc.T / T, ((0, 0), (0, NC_PAD - NC))).astype(jnp.bfloat16)
    bfcp = jnp.pad(bfc, ((0, NC_PAD - NC),)).reshape(1, NC_PAD).astype(jnp.float32)
    return (w1c, b1, w2c, b2, wfcp, bfcp)


def prepare_input(x):
    """(B, T, D_IN) -> (B, T_SRC, D_PAD) bf16: time zero-pad 3*PAD each side
    (covers conv1's pad=2 plus the extended halo), channel zero-pad to 128.
    Emitting bf16 here halves the x HBM->VMEM DMA and moves the f32->bf16
    cast to the 128-lane source instead of the 5x-duplicated im2col slab."""
    xp = jnp.pad(x, ((0, 0), (X_PAD, X_PAD), (0, D_PAD - D_IN)))
    return xp.astype(jnp.bfloat16)


def _default_batch_tile(batch):
    """Keep grid=(1,) unless the batch is big enough that splitting still
    leaves >=512 im2col rows per grid step (fills the 256-row MXU on v6e/v7x,
    4x128 rows on v5e) AND the tile stays 8-aligned so the (bt, 128) f32
    output block is sublane-legal on every generation.  In particular B=2 is
    never micro-split across v7x's two TensorCores."""
    if batch % 8 != 0:
        return batch                       # full batch -> grid=(1,)
    tile = batch
    while tile % 2 == 0 and tile // 2 >= 8 and (tile // 2) * T_EXT >= 512:
        tile //= 2
    return tile


# ---------------------------------------------------------------------------
# forward wrappers
# ---------------------------------------------------------------------------
def cnn_backbone_prepared(x, prep, batch_tile=None):
    """x: (B, T, D_IN) float32, prep: output of prepare_params.
    Returns logits (B, NC) float32.  jit-friendly."""
    w1c, b1, w2c, b2, wfcp, bfcp = prep
    x_ext = prepare_input(x)
    bn = x_ext.shape[0]
    if batch_tile is None:
        batch_tile = _default_batch_tile(bn)
    assert bn % batch_tile == 0, (bn, batch_tile)
    assert batch_tile == bn or batch_tile % 8 == 0, batch_tile  # sublane-legal out block
    n_tiles = bn // batch_tile

    grid_spec = pltpu.PrefetchScalarGridSpec(
        num_scalar_prefetch=0,
        grid=(n_tiles,),
        in_specs=[
            pl.BlockSpec((batch_tile, T_SRC, D_PAD), lambda b: (b, 0, 0)),  # x
            pl.BlockSpec((K * D_PAD, C1), lambda b: (0, 0)),                # w1
            pl.BlockSpec((1, C1), lambda b: (0, 0)),                        # b1
            pl.BlockSpec((K * C1, C2), lambda b: (0, 0)),                   # w2
            pl.BlockSpec((1, C2), lambda b: (0, 0)),                        # b2
            pl.BlockSpec((C2, NC_PAD), lambda b: (0, 0)),                   # wfc
            pl.BlockSpec((1, NC_PAD), lambda b: (0, 0)),                    # bfc
        ],
        out_specs=pl.BlockSpec((batch_tile, NC_PAD), lambda b: (b, 0)),
    )

    # Advisory cost so XLA schedules this tiny custom call sensibly.
    flops = 2 * bn * (T_EXT * K * D_PAD * C1 + T * K * C1 * C2 + C2 * NC_PAD)
    bytes_accessed = (
        bn * T_SRC * D_PAD * 2                       # x (bf16)
        + (K * D_PAD * C1 + K * C1 * C2 + C2 * NC_PAD) * 2   # bf16 weights
        + (C1 + C2 + NC_PAD) * 4                     # f32 biases
        + bn * NC_PAD * 4)                           # output
    cost = pl.CostEstimate(flops=flops, transcendentals=0,
                           bytes_accessed=bytes_accessed)

    out = pl.pallas_call(
        _cnn_backbone_kernel,
        out_shape=jax.ShapeDtypeStruct((bn, NC_PAD), jnp.float32),
        grid_spec=grid_spec,
        compiler_params=pltpu.CompilerParams(
            dimension_semantics=("parallel",)),
        cost_estimate=cost,
    )(x_ext, w1c, b1, w2c, b2, wfcp, bfcp)
    return out[:, :NC]


def make_cnn_backbone(raw_params, batch_tile=None):
    """Fold parameters ONCE, cache them, and return a jitted forward(x)."""
    prep = prepare_params(raw_params)                 # folding runs once, here
    prep = jax.tree_util.tree_map(jnp.asarray, prep)  # cache folded tensors

    @jax.jit
    def forward(x):
        return cnn_backbone_prepared(x, prep, batch_tile)

    return forward


# ---------------------------------------------------------------------------
# references
# ---------------------------------------------------------------------------
def ref_forward_prepared(x_ext, prep):
    """Pure-JAX reference with the SAME folded params and bf16 cast points as
    the kernel (tight tolerance check of the kernel implementation)."""
    w1c, b1, w2c, b2, wfcp, bfcp = prep
    bn = x_ext.shape[0]
    lhs1 = jnp.concatenate([x_ext[:, k:k + T_EXT, :] for k in range(K)], axis=-1)
    lhs1 = lhs1.reshape(bn * T_EXT, K * D_PAD)
    h1 = jnp.maximum(jnp.dot(lhs1, w1c, preferred_element_type=jnp.float32) + b1, 0.0)
    h1 = h1.reshape(bn, T_EXT, C1)
    t = jnp.arange(T_EXT)[None, :, None]
    h1 = jnp.where((t >= 2 * PAD) & (t < 2 * PAD + T), h1, 0.0).astype(jnp.bfloat16)
    lhs2 = jnp.concatenate([h1[:, PAD + k:PAD + k + T, :] for k in range(K)], axis=-1)
    lhs2 = lhs2.reshape(bn * T, K * C1)
    h2 = jnp.maximum(jnp.dot(lhs2, w2c, preferred_element_type=jnp.float32) + b2, 0.0)
    pooled = jnp.sum(h2.reshape(bn, T, C2), axis=1)
    logits = jnp.dot(pooled.astype(jnp.bfloat16), wfcp,
                     preferred_element_type=jnp.float32) + bfcp
    return logits[:, :NC]


def ref_forward_f32(x, raw):
    """Pure-f32, unfolded PyTorch-style reference (semantics sanity check)."""
    (w1, cb1, g1, be1, m1, v1, w2, cb2, g2, be2, m2, v2, wfc, bfc) = raw
    xp = jnp.pad(x, ((0, 0), (PAD, PAD), (0, 0)))
    h1 = sum(jnp.einsum('btd,cd->btc', xp[:, k:k + T, :], w1[:, :, k])
             for k in range(K)) + cb1
    h1 = (h1 - m1) / jnp.sqrt(v1 + BN_EPS) * g1 + be1
    h1 = jnp.maximum(h1, 0.0)
    h1p = jnp.pad(h1, ((0, 0), (PAD, PAD), (0, 0)))
    h2 = sum(jnp.einsum('btd,cd->btc', h1p[:, k:k + T, :], w2[:, :, k])
             for k in range(K)) + cb2
    h2 = (h2 - m2) / jnp.sqrt(v2 + BN_EPS) * g2 + be2
    h2 = jnp.maximum(h2, 0.0)
    pooled = jnp.mean(h2, axis=1)
    return pooled @ wfc.T + bfc


if __name__ == "__main__":
    key = jax.random.PRNGKey(0)
    k_param, k_x = jax.random.split(key)
    raw = make_params(k_param)
    x = jax.random.normal(k_x, (B, T, D_IN), jnp.float32)

    # Parameter folding happens once, inside make_cnn_backbone; the returned
    # forward is jitted and reuses the cached folded tensors every call.
    forward = make_cnn_backbone(raw)
    out = jax.block_until_ready(forward(x))
    assert out.shape == (B, NC), out.shape
    out2 = jax.block_until_ready(forward(x))          # second call: no re-folding
    assert jnp.array_equal(out, out2)

    # Tight check against a bf16-matched reference (same folded params & casts).
    prep = prepare_params(raw)
    ref_bf16 = jax.block_until_ready(ref_forward_prepared(prepare_input(x), prep))
    err_bf16 = float(jnp.max(jnp.abs(out - ref_bf16)))
    assert jnp.allclose(out, ref_bf16, atol=2e-3, rtol=2e-3), f"bf16 ref err {err_bf16}"

    # Loose check against the unfolded full-f32 PyTorch-style reference
    # (differences come only from bf16 matmul operands).
    ref_f32 = jax.block_until_ready(ref_forward_f32(x, raw))
    err_f32 = float(jnp.max(jnp.abs(out - ref_f32)))
    assert jnp.allclose(out, ref_f32, atol=1e-1, rtol=1e-1), f"f32 ref err {err_f32}"

    print("KERNEL_OK")
</pallas_src>

<mosaic_0001>
module attributes {stable_mosaic.version = 11 : i64} {
  func.func @_cnn_backbone_kernel(%arg0: i32, %arg1: memref<2x28x128xbf16, #tpu.memory_space<vmem>>, %arg2: memref<640x128xbf16, #tpu.memory_space<vmem>>, %arg3: memref<1x128xf32, #tpu.memory_space<vmem>>, %arg4: memref<640x256xbf16, #tpu.memory_space<vmem>>, %arg5: memref<1x256xf32, #tpu.memory_space<vmem>>, %arg6: memref<256x128xbf16, #tpu.memory_space<vmem>>, %arg7: memref<1x128xf32, #tpu.memory_space<vmem>>, %arg8: memref<2x128xf32, #tpu.memory_space<vmem>>) attributes {dimension_semantics = [#tpu.dimension_semantics<parallel>], iteration_bounds = array<i64: 1>, scalar_prefetch = 0 : i64, scratch_operands = 0 : i64, tpu.core_type = #tpu.core_type<tc>, window_params = [{transform_indices = @transform_0, window_bounds = array<i64: 2, 28, 128>}, {pipeline_mode = #tpu.pipeline_mode<synchronous>, transform_indices = @transform_1, window_bounds = array<i64: 640, 128>}, {pipeline_mode = #tpu.pipeline_mode<synchronous>, transform_indices = @transform_2, window_bounds = array<i64: 1, 128>}, {pipeline_mode = #tpu.pipeline_mode<synchronous>, transform_indices = @transform_3, window_bounds = array<i64: 640, 256>}, {pipeline_mode = #tpu.pipeline_mode<synchronous>, transform_indices = @transform_4, window_bounds = array<i64: 1, 256>}, {pipeline_mode = #tpu.pipeline_mode<synchronous>, transform_indices = @transform_5, window_bounds = array<i64: 256, 128>}, {pipeline_mode = #tpu.pipeline_mode<synchronous>, transform_indices = @transform_6, window_bounds = array<i64: 1, 128>}, {transform_indices = @transform_7, window_bounds = array<i64: 2, 128>}]} {
    %c0 = arith.constant 0 : index
    %c0_0 = arith.constant 0 : index
    %c0_1 = arith.constant 0 : index
    %0 = vector.load %arg1[%c0, %c0_0, %c0_1] : memref<2x28x128xbf16, #tpu.memory_space<vmem>>, vector<2x28x128xbf16>
    %1 = vector.extract_strided_slice %0 {offsets = [0, 0, 0], sizes = [2, 24, 128], strides = [1, 1, 1]} : vector<2x28x128xbf16> to vector<2x24x128xbf16>
    %2 = vector.extract_strided_slice %0 {offsets = [0, 1, 0], sizes = [2, 24, 128], strides = [1, 1, 1]} : vector<2x28x128xbf16> to vector<2x24x128xbf16>
    %3 = vector.extract_strided_slice %0 {offsets = [0, 2, 0], sizes = [2, 24, 128], strides = [1, 1, 1]} : vector<2x28x128xbf16> to vector<2x24x128xbf16>
    %4 = vector.extract_strided_slice %0 {offsets = [0, 3, 0], sizes = [2, 24, 128], strides = [1, 1, 1]} : vector<2x28x128xbf16> to vector<2x24x128xbf16>
    %5 = vector.extract_strided_slice %0 {offsets = [0, 4, 0], sizes = [2, 24, 128], strides = [1, 1, 1]} : vector<2x28x128xbf16> to vector<2x24x128xbf16>
    %6 = tpu.concatenate %1, %2, %3, %4, %5 in 2 : vector<2x24x128xbf16>, vector<2x24x128xbf16>, vector<2x24x128xbf16>, vector<2x24x128xbf16>, vector<2x24x128xbf16> -> vector<2x24x640xbf16>
    %7 = vector.shape_cast %6 : vector<2x24x640xbf16> to vector<48x640xbf16>
    %c0_2 = arith.constant 0 : index
    %c0_3 = arith.constant 0 : index
    %8 = vector.load %arg2[%c0_2, %c0_3] : memref<640x128xbf16, #tpu.memory_space<vmem>>, vector<640x128xbf16>
    %cst = arith.constant dense<0.000000e+00> : vector<48x128xf32>
    %9 = tpu.matmul %7, %8, %cst {dimension_numbers = #tpu.dot_dimension_numbers<[1], [0], [0], [1], [0, 0, 1, 1], [], []>} : vector<48x640xbf16>, vector<640x128xbf16>, vector<48x128xf32> -> vector<48x128xf32>
    %c0_4 = arith.constant 0 : index
    %c0_5 = arith.constant 0 : index
    %10 = vector.load %arg3[%c0_4, %c0_5] : memref<1x128xf32, #tpu.memory_space<vmem>>, vector<1x128xf32>
    %11 = vector.broadcast %10 : vector<1x128xf32> to vector<48x128xf32>
    %12 = arith.addf %9, %11 : vector<48x128xf32>
    %cst_6 = arith.constant 0.000000e+00 : f32
    %13 = vector.broadcast %cst_6 : f32 to vector<48x128xf32>
    %14 = arith.maximumf %12, %13 : vector<48x128xf32>
    %15 = vector.shape_cast %14 : vector<48x128xf32> to vector<2x24x128xf32>
    %16 = tpu.iota {dimensions = array<i32: 1>} : vector<1x24x1xi32>
    %c4_i32 = arith.constant 4 : i32
    %17 = vector.broadcast %c4_i32 : i32 to vector<1x24x1xi32>
    %18 = arith.cmpi sge, %16, %17 : vector<1x24x1xi32>
    %c20_i32 = arith.constant 20 : i32
    %19 = vector.broadcast %c20_i32 : i32 to vector<1x24x1xi32>
    %20 = arith.cmpi slt, %16, %19 : vector<1x24x1xi32>
    %21 = arith.andi %18, %20 : vector<1x24x1xi1>
    %cst_7 = arith.constant 0.000000e+00 : f32
    %22 = vector.shape_cast %21 : vector<1x24x1xi1> to vector<1x24x1xi1>
    %23 = vector.broadcast %22 : vector<1x24x1xi1> to vector<2x24x128xi1>
    %24 = vector.broadcast %cst_7 : f32 to vector<2x24x128xf32>
    %25 = arith.select %23, %15, %24 : vector<2x24x128xi1>, vector<2x24x128xf32>
    %26 = arith.truncf %25 : vector<2x24x128xf32> to vector<2x24x128xbf16>
    %27 = vector.extract_strided_slice %26 {offsets = [0, 2, 0], sizes = [2, 16, 128], strides = [1, 1, 1]} : vector<2x24x128xbf16> to vector<2x16x128xbf16>
    %28 = vector.extract_strided_slice %26 {offsets = [0, 3, 0], sizes = [2, 16, 128], strides = [1, 1, 1]} : vector<2x24x128xbf16> to vector<2x16x128xbf16>
    %29 = vector.extract_strided_slice %26 {offsets = [0, 4, 0], sizes = [2, 16, 128], strides = [1, 1, 1]} : vector<2x24x128xbf16> to vector<2x16x128xbf16>
    %30 = vector.extract_strided_slice %26 {offsets = [0, 5, 0], sizes = [2, 16, 128], strides = [1, 1, 1]} : vector<2x24x128xbf16> to vector<2x16x128xbf16>
    %31 = vector.extract_strided_slice %26 {offsets = [0, 6, 0], sizes = [2, 16, 128], strides = [1, 1, 1]} : vector<2x24x128xbf16> to vector<2x16x128xbf16>
    %32 = tpu.concatenate %27, %28, %29, %30, %31 in 2 : vector<2x16x128xbf16>, vector<2x16x128xbf16>, vector<2x16x128xbf16>, vector<2x16x128xbf16>, vector<2x16x128xbf16> -> vector<2x16x640xbf16>
    %33 = vector.shape_cast %32 : vector<2x16x640xbf16> to vector<32x640xbf16>
    %c0_8 = arith.constant 0 : index
    %c0_9 = arith.constant 0 : index
    %34 = vector.load %arg4[%c0_8, %c0_9] : memref<640x256xbf16, #tpu.memory_space<vmem>>, vector<640x256xbf16>
    %cst_10 = arith.constant dense<0.000000e+00> : vector<32x256xf32>
    %35 = tpu.matmul %33, %34, %cst_10 {dimension_numbers = #tpu.dot_dimension_numbers<[1], [0], [0], [1], [0, 0, 1, 1], [], []>} : vector<32x640xbf16>, vector<640x256xbf16>, vector<32x256xf32> -> vector<32x256xf32>
    %c0_11 = arith.constant 0 : index
    %c0_12 = arith.constant 0 : index
    %36 = vector.load %arg5[%c0_11, %c0_12] : memref<1x256xf32, #tpu.memory_space<vmem>>, vector<1x256xf32>
    %37 = vector.broadcast %36 : vector<1x256xf32> to vector<32x256xf32>
    %38 = arith.addf %35, %37 : vector<32x256xf32>
    %cst_13 = arith.constant 0.000000e+00 : f32
    %39 = vector.broadcast %cst_13 : f32 to vector<32x256xf32>
    %40 = arith.maximumf %38, %39 : vector<32x256xf32>
    %41 = vector.shape_cast %40 : vector<32x256xf32> to vector<2x16x256xf32>
    %cst_14 = arith.constant dense<0.000000e+00> : vector<2x256xf32>
    %42 = vector.multi_reduction <add>, %41, %cst_14 [1] : vector<2x16x256xf32> to vector<2x256xf32>
    %43 = arith.truncf %42 : vector<2x256xf32> to vector<2x256xbf16>
    %c0_15 = arith.constant 0 : index
    %c0_16 = arith.constant 0 : index
    %44 = vector.load %arg6[%c0_15, %c0_16] : memref<256x128xbf16, #tpu.memory_space<vmem>>, vector<256x128xbf16>
    %cst_17 = arith.constant dense<0.000000e+00> : vector<2x128xf32>
    %45 = tpu.matmul %43, %44, %cst_17 {dimension_numbers = #tpu.dot_dimension_numbers<[1], [0], [0], [1], [0, 0, 1, 1], [], []>} : vector<2x256xbf16>, vector<256x128xbf16>, vector<2x128xf32> -> vector<2x128xf32>
    %c0_18 = arith.constant 0 : index
    %c0_19 = arith.constant 0 : index
    %46 = vector.load %arg7[%c0_18, %c0_19] : memref<1x128xf32, #tpu.memory_space<vmem>>, vector<1x128xf32>
    %47 = vector.broadcast %46 : vector<1x128xf32> to vector<2x128xf32>
    %48 = arith.addf %45, %47 : vector<2x128xf32>
    %c0_20 = arith.constant 0 : index
    %c0_21 = arith.constant 0 : index
    %49 = vector.load %arg8[%c0_20, %c0_21] : memref<2x128xf32, #tpu.memory_space<vmem>>, vector<2x128xf32>
    tpu.vector_store %arg8[%c0_20, %c0_21], %48 {strides = array<i32>} : memref<2x128xf32, #tpu.memory_space<vmem>>, vector<2x128xf32>,
    return
  }
  func.func @transform_0(%arg0: i32) -> (i32, i32, i32) {
    %c0_i32 = arith.constant 0 : i32
    %c0_i32_0 = arith.constant 0 : i32
    %c0_i32_1 = arith.constant 0 : i32
    return %arg0, %c0_i32, %c0_i32_0 : i32, i32, i32
  }
  func.func @transform_1(%arg0: i32) -> (i32, i32) {
    %c0_i32 = arith.constant 0 : i32
    %c0_i32_0 = arith.constant 0 : i32
    %c0_i32_1 = arith.constant 0 : i32
    return %c0_i32, %c0_i32_0 : i32, i32
  }
  func.func @transform_2(%arg0: i32) -> (i32, i32) {
    %c0_i32 = arith.constant 0 : i32
    %c0_i32_0 = arith.constant 0 : i32
    %c0_i32_1 = arith.constant 0 : i32
    return %c0_i32, %c0_i32_0 : i32, i32
  }
  func.func @transform_3(%arg0: i32) -> (i32, i32) {
    %c0_i32 = arith.constant 0 : i32
    %c0_i32_0 = arith.constant 0 : i32
    %c0_i32_1 = arith.constant 0 : i32
    return %c0_i32, %c0_i32_0 : i32, i32
  }
  func.func @transform_4(%arg0: i32) -> (i32, i32) {
    %c0_i32 = arith.constant 0 : i32
    %c0_i32_0 = arith.constant 0 : i32
    %c0_i32_1 = arith.constant 0 : i32
    return %c0_i32, %c0_i32_0 : i32, i32
  }
  func.func @transform_5(%arg0: i32) -> (i32, i32) {
    %c0_i32 = arith.constant 0 : i32
    %c0_i32_0 = arith.constant 0 : i32
    %c0_i32_1 = arith.constant 0 : i32
    return %c0_i32, %c0_i32_0 : i32, i32
  }
  func.func @transform_6(%arg0: i32) -> (i32, i32) {
    %c0_i32 = arith.constant 0 : i32
    %c0_i32_0 = arith.constant 0 : i32
    %c0_i32_1 = arith.constant 0 : i32
    return %c0_i32, %c0_i32_0 : i32, i32
  }
  func.func @transform_7(%arg0: i32) -> (i32, i32) {
    %c0_i32 = arith.constant 0 : i32
    %c0_i32_0 = arith.constant 0 : i32
    return %arg0, %c0_i32 : i32, i32
  }
}

</mosaic_0001>

<llo_original>
// kernel: forward.1
$region0: #{forward.1}
  #allocation0 [shape = 'u32[]', space=smem, size = 0x4, offset = 0x4, fixed_abs, tag = 'smem constant byte address 0x4 - core index']
  #allocation1 [shape = 'u32[144,128]{1,0:T(1,128)}', space=vmem, size = 0x12000, scoped, tag = 'internal scratch']
  %s0 = inlined_call_operand.vmem [shape: bf16[2,28,128], index: 0, kind: input, shape index: {}]
  %s1 = inlined_call_operand.vmem [shape: bf16[640,128], index: 1, kind: input, shape index: {}]
  %s2 = inlined_call_operand.vmem [shape: f32[1,128], index: 2, kind: input, shape index: {}]
  %s3 = inlined_call_operand.vmem [shape: bf16[640,256], index: 3, kind: input, shape index: {}]
  %s4 = inlined_call_operand.vmem [shape: f32[1,256], index: 4, kind: input, shape index: {}]
  %s5 = inlined_call_operand.vmem [shape: bf16[256,128], index: 5, kind: input, shape index: {}]
  %s6 = inlined_call_operand.vmem [shape: f32[1,128], index: 6, kind: input, shape index: {}]
  %s7 = inlined_call_operand.hbm [shape: f32[2,128], index: 7, kind: output, shape index: {}]
  %s8 = sld [smem:[#allocation0]]
  $region38: #{forward.1} parent=0
    _
  %s10 = ssub.s32 1, %s8
  %s11 = scalar_select 0, %s10, %s8
  $region1: #{forward.1} parent=0
    #allocation2 [shape = 'u8[1024]{0}', space=vmem, size = 0x400, scoped, tag = 'output window, operand 0, single buffered']
    #allocation3 [shape = 's32[1]{0}', space=sflag, size = 0x4, scoped, tag = 'scoped memory for forward.1']
    %12 = vsyncpa [#allocation3], 0
    // Predicated region
    $region2: #{forward.1} parent=1 // pred_check
      _
    $region3: #{forward.1} parent=1 // pred_check_branch
      %14 = sbr.rel (0) target = $region5
    $region4: #{forward.1} parent=1 // pred_region
      _
    $region5: #{forward.1} parent=1 // pred_fallthru
      _
    // Predicated region
    $region6: #{forward.1} parent=1 // pred_check
      _
    $region7: #{forward.1} parent=1 // pred_check_branch
      %16 = sbr.rel (0) target = $region9
    $region8: #{forward.1} parent=1 // pred_region
      _
    $region9: #{forward.1} parent=1 // pred_fallthru
      _
    // Predicated region
    $region10: #{forward.1} parent=1 // pred_check
      _
    $region11: #{forward.1} parent=1 // pred_check_branch
      %18 = sbr.rel (0) target = $region13
    $region12: #{forward.1} parent=1 // pred_region
      _
    $region13: #{forward.1} parent=1 // pred_fallthru
      _
    // Predicated region
    $region14: #{forward.1} parent=1 // pred_check
      _
    $region15: #{forward.1} parent=1 // pred_check_branch
      %20 = sbr.rel (0) target = $region17
    $region16: #{forward.1} parent=1 // pred_region
      _
    $region17: #{forward.1} parent=1 // pred_fallthru
      _
    // Predicated region
    $region18: #{forward.1} parent=1 // pred_check
      _
    $region19: #{forward.1} parent=1 // pred_check_branch
      %22 = sbr.rel (0) target = $region21
    $region20: #{forward.1} parent=1 // pred_region
      _
    $region21: #{forward.1} parent=1 // pred_fallthru
      _
    // Predicated region
    $region22: #{forward.1} parent=1 // pred_check
      _
    $region23: #{forward.1} parent=1 // pred_check_branch
      %24 = sbr.rel (0) target = $region25
    $region24: #{forward.1} parent=1 // pred_region
      _
    $region25: #{forward.1} parent=1 // pred_fallthru
      _
    // Predicated region
    $region26: #{forward.1} parent=1 // pred_check
      _
    $region27: #{forward.1} parent=1 // pred_check_branch
      %26 = sbr.rel (0) target = $region29
    $region28: #{forward.1} parent=1 // pred_region
      _
    $region29: #{forward.1} parent=1 // pred_fallthru
      _
    %v28 = vld [vmem:[%s0] sm:$0xf]
    %v29 = vld [vmem:[%s0 + $0x4] sm:$0xf]
    %v30 = vld [vmem:[%s0 + $0x8] sm:$0xf]
    %v31 = vld [vmem:[%s0 + $0xc] sm:$0x3]
    %v32 = vld [vmem:[%s0 + $0x10] sm:$0xf]
    %v33 = vld [vmem:[%s0 + $0x14] sm:$0xf]
    %v34 = vld [vmem:[%s0 + $0x18] sm:$0xf]
    %v35 = vld [vmem:[%s0 + $0x1c] sm:$0x3]
    %v42 = vunpack.c.l.b16 %v28
    %v43 = vunpack.c.l.b16 %v29
    %v44 = vunpack.c.l.b16 %v30
    %v45 = vunpack.c.l.b16 %v32
    %v46 = vunpack.c.l.b16 %v33
    %v47 = vunpack.c.l.b16 %v34
    %v50 = vunpack.c.l.b16 %v31
    %v51 = vunpack.c.l.b16 %v35
    %v52 = vpack.c.b16 %v43, %v42
    %v53 = vpack.c.b16 %v50, %v44
    %v54 = vpack.c.b16 %v46, %v45
    %v55 = vpack.c.b16 %v51, %v47
    %vm56 = vsmask.f32 7424
    %v58 = vshrl.u32 %v52, 16
    %v60 = vshll.u32 %v52, 16
    %v62 = vrot.slane %v60, 1
    %v63 = vor.u32 %v58, %v62
    %v65 = vshll.u32 %v53, 16
    %v67 = vrot.slane %v65, 1
    %v68 = vsel %vm56, %v63, %v67
    %v69 = vshrl.u32 %v53, 16
    %v71 = vor.u32 %v69, %v67
    %v73 = vshrl.u32 %v54, 16
    %v75 = vshll.u32 %v54, 16
    %v77 = vrot.slane %v75, 1
    %v78 = vor.u32 %v73, %v77
    %v80 = vshll.u32 %v55, 16
    %v82 = vrot.slane %v80, 1
    %v83 = vsel %vm56, %v78, %v82
    %v84 = vshrl.u32 %v55, 16
    %v86 = vor.u32 %v84, %v82
    %vm87 = vcmask 1046528
    %v88 = vrot.slane %v52, 1
    %v89 = vrot.slane %v53, 1
    %v90 = vsel %vm87, %v88, %v89
    %v91 = vrot.slane %v54, 1
    %v92 = vrot.slane %v55, 1
    %v93 = vsel %vm87, %v91, %v92
    %vm94 = vsmask.f32 6400
    %v95 = vrot.slane %v58, 1
    %v96 = vrot.slane %v60, 2
    %v97 = vor.u32 %v95, %v96
    %v98 = vrot.slane %v69, 1
    %v99 = vrot.slane %v65, 2
    %v100 = vor.u32 %v98, %v99
    %v101 = vsel %vm94, %v97, %v100
    %v102 = vrot.slane %v73, 1
    %v103 = vrot.slane %v75, 2
    %v104 = vor.u32 %v102, %v103
    %v105 = vrot.slane %v84, 1
    %v106 = vrot.slane %v80, 2
    %v107 = vor.u32 %v105, %v106
    %v108 = vsel %vm94, %v104, %v107
    %vm109 = vcmask 1045504
    %v110 = vrot.slane %v52, 2
    %v111 = vrot.slane %v53, 2
    %v112 = vsel %vm109, %v110, %v111
    %v113 = vrot.slane %v54, 2
    %v114 = vrot.slane %v55, 2
    %v115 = vsel %vm109, %v113, %v114
    %v116 = vunpack.c.l.b16 %v68
    %v117 = vunpack.c.l.b16 %v90
    %v118 = vunpack.c.l.b16 %v101
    %v119 = vunpack.c.l.b16 %v112
    %v120 = vunpack.c.h.b16 %v68
    %v121 = vunpack.c.h.b16 %v90
    %v122 = vunpack.c.h.b16 %v101
    %v123 = vunpack.c.h.b16 %v112
    %v124 = vunpack.c.l.b16 %v71
    %v125 = vunpack.c.l.b16 %v89
    %v126 = vunpack.c.l.b16 %v100
    %v127 = vunpack.c.l.b16 %v111
    %v128 = vunpack.c.l.b16 %v83
    %v129 = vunpack.c.l.b16 %v93
    %v130 = vunpack.c.l.b16 %v108
    %v131 = vunpack.c.l.b16 %v115
    %v132 = vunpack.c.h.b16 %v83
    %v133 = vunpack.c.h.b16 %v93
    %v134 = vunpack.c.h.b16 %v108
    %v135 = vunpack.c.h.b16 %v115
    %v136 = vunpack.c.l.b16 %v86
    %v137 = vunpack.c.l.b16 %v92
    %v138 = vunpack.c.l.b16 %v107
    %v139 = vunpack.c.l.b16 %v114
    %v140 = vld [vmem:[%s1] sm:$0xf]
    %v141 = vld [vmem:[%s1 + $0x4] sm:$0xf]
    %v142 = vld [vmem:[%s1 + $0x8] sm:$0xf]
    %v143 = vld [vmem:[%s1 + $0xc] sm:$0xf]
    %v144 = vld [vmem:[%s1 + $0x10] sm:$0xf]
    %v145 = vld [vmem:[%s1 + $0x14] sm:$0xf]
    %v146 = vld [vmem:[%s1 + $0x18] sm:$0xf]
    %v147 = vld [vmem:[%s1 + $0x1c] sm:$0xf]
    %v148 = vld [vmem:[%s1 + $0x20] sm:$0xf]
    %v149 = vld [vmem:[%s1 + $0x24] sm:$0xf]
    %v150 = vld [vmem:[%s1 + $0x28] sm:$0xf]
    %v151 = vld [vmem:[%s1 + $0x2c] sm:$0xf]
    %v152 = vld [vmem:[%s1 + $0x30] sm:$0xf]
    %v153 = vld [vmem:[%s1 + $0x34] sm:$0xf]
    %v154 = vld [vmem:[%s1 + $0x38] sm:$0xf]
    %v155 = vld [vmem:[%s1 + $0x3c] sm:$0xf]
    %v156 = vld [vmem:[%s1 + $0x40] sm:$0xf]
    %v157 = vld [vmem:[%s1 + $0x44] sm:$0xf]
    %v158 = vld [vmem:[%s1 + $0x48] sm:$0xf]
    %v159 = vld [vmem:[%s1 + $0x4c] sm:$0xf]
    %v160 = vld [vmem:[%s1 + $0x50] sm:$0xf]
    %v161 = vld [vmem:[%s1 + $0x54] sm:$0xf]
    %v162 = vld [vmem:[%s1 + $0x58] sm:$0xf]
    %v163 = vld [vmem:[%s1 + $0x5c] sm:$0xf]
    %v164 = vld [vmem:[%s1 + $0x60] sm:$0xf]
    %v165 = vld [vmem:[%s1 + $0x64] sm:$0xf]
    %v166 = vld [vmem:[%s1 + $0x68] sm:$0xf]
    %v167 = vld [vmem:[%s1 + $0x6c] sm:$0xf]
    %v168 = vld [vmem:[%s1 + $0x70] sm:$0xf]
    %v169 = vld [vmem:[%s1 + $0x74] sm:$0xf]
    %v170 = vld [vmem:[%s1 + $0x78] sm:$0xf]
    %v171 = vld [vmem:[%s1 + $0x7c] sm:$0xf]
    %v172 = vld [vmem:[%s1 + $0x80] sm:$0xf]
    %v173 = vld [vmem:[%s1 + $0x84] sm:$0xf]
    %v174 = vld [vmem:[%s1 + $0x88] sm:$0xf]
    %v175 = vld [vmem:[%s1 + $0x8c] sm:$0xf]
    %v176 = vld [vmem:[%s1 + $0x90] sm:$0xf]
    %v177 = vld [vmem:[%s1 + $0x94] sm:$0xf]
    %v178 = vld [vmem:[%s1 + $0x98] sm:$0xf]
    %v179 = vld [vmem:[%s1 + $0x9c] sm:$0xf]
    %v180 = vld [vmem:[%s1 + $0xa0] sm:$0xf]
    %v181 = vld [vmem:[%s1 + $0xa4] sm:$0xf]
    %v182 = vld [vmem:[%s1 + $0xa8] sm:$0xf]
    %v183 = vld [vmem:[%s1 + $0xac] sm:$0xf]
    %v184 = vld [vmem:[%s1 + $0xb0] sm:$0xf]
    %v185 = vld [vmem:[%s1 + $0xb4] sm:$0xf]
    %v186 = vld [vmem:[%s1 + $0xb8] sm:$0xf]
    %v187 = vld [vmem:[%s1 + $0xbc] sm:$0xf]
    %v188 = vld [vmem:[%s1 + $0xc0] sm:$0xf]
    %v189 = vld [vmem:[%s1 + $0xc4] sm:$0xf]
    %v190 = vld [vmem:[%s1 + $0xc8] sm:$0xf]
    %v191 = vld [vmem:[%s1 + $0xcc] sm:$0xf]
    %v192 = vld [vmem:[%s1 + $0xd0] sm:$0xf]
    %v193 = vld [vmem:[%s1 + $0xd4] sm:$0xf]
    %v194 = vld [vmem:[%s1 + $0xd8] sm:$0xf]
    %v195 = vld [vmem:[%s1 + $0xdc] sm:$0xf]
    %v196 = vld [vmem:[%s1 + $0xe0] sm:$0xf]
    %v197 = vld [vmem:[%s1 + $0xe4] sm:$0xf]
    %v198 = vld [vmem:[%s1 + $0xe8] sm:$0xf]
    %v199 = vld [vmem:[%s1 + $0xec] sm:$0xf]
    %v200 = vld [vmem:[%s1 + $0xf0] sm:$0xf]
    %v201 = vld [vmem:[%s1 + $0xf4] sm:$0xf]
    %v202 = vld [vmem:[%s1 + $0xf8] sm:$0xf]
    %v203 = vld [vmem:[%s1 + $0xfc] sm:$0xf]
    %v204 = vld [vmem:[%s1 + $0x100] sm:$0xf]
    %v205 = vld [vmem:[%s1 + $0x104] sm:$0xf]
    %v206 = vld [vmem:[%s1 + $0x108] sm:$0xf]
    %v207 = vld [vmem:[%s1 + $0x10c] sm:$0xf]
    %v208 = vld [vmem:[%s1 + $0x110] sm:$0xf]
    %v209 = vld [vmem:[%s1 + $0x114] sm:$0xf]
    %v210 = vld [vmem:[%s1 + $0x118] sm:$0xf]
    %v211 = vld [vmem:[%s1 + $0x11c] sm:$0xf]
    %v212 = vld [vmem:[%s1 + $0x120] sm:$0xf]
    %v213 = vld [vmem:[%s1 + $0x124] sm:$0xf]
    %v214 = vld [vmem:[%s1 + $0x128] sm:$0xf]
    %v215 = vld [vmem:[%s1 + $0x12c] sm:$0xf]
    %v216 = vld [vmem:[%s1 + $0x130] sm:$0xf]
    %v217 = vld [vmem:[%s1 + $0x134] sm:$0xf]
    %v218 = vld [vmem:[%s1 + $0x138] sm:$0xf]
    %v219 = vld [vmem:[%s1 + $0x13c] sm:$0xf]
    %v220 = vld [vmem:[%s2] sm:$0x1]
    %v222 = vlaneseq
    %v223 = vshrl.u32 %v222, 7
    %v224 = vsub.s32 0, %v223
    %v225 = vrot.slane %v220, %v224
    %v227 = vpack.c.b16 %v120, %v116
    %v228 = vpack.c.b16 %v121, %v117
    %v229 = vpack.c.b16 %v122, %v118
    %v230 = vpack.c.b16 %v123, %v119
    %v231 = vpack.c.b16 %v45, %v44
    %v232 = vpack.c.b16 %v128, %v124
    %v233 = vpack.c.b16 %v129, %v125
    %v234 = vpack.c.b16 %v130, %v126
    %v235 = vpack.c.b16 %v131, %v127
    %v236 = vpack.c.b16 %v47, %v46
    %v237 = vpack.c.b16 %v136, %v132
    %v238 = vpack.c.b16 %v137, %v133
    %v239 = vpack.c.b16 %v138, %v134
    %v240 = vpack.c.b16 %v139, %v135
    %v336 = vunpack.c.l.b16 %v140
    %v337 = vunpack.c.l.b16 %v141
    %v338 = vunpack.c.l.b16 %v142
    %v339 = vunpack.c.l.b16 %v143
    %v340 = vunpack.c.l.b16 %v144
    %v341 = vunpack.c.l.b16 %v145
    %v342 = vunpack.c.l.b16 %v146
    %v343 = vunpack.c.l.b16 %v147
    %v344 = vunpack.c.l.b16 %v148
    %v345 = vunpack.c.l.b16 %v149
    %v346 = vunpack.c.l.b16 %v150
    %v347 = vunpack.c.l.b16 %v151
    %v348 = vunpack.c.l.b16 %v152
    %v349 = vunpack.c.l.b16 %v153
    %v350 = vunpack.c.l.b16 %v154
    %v351 = vunpack.c.l.b16 %v155
    %v352 = vunpack.c.l.b16 %v156
    %v353 = vunpack.c.l.b16 %v157
    %v354 = vunpack.c.l.b16 %v158
    %v355 = vunpack.c.l.b16 %v159
    %v356 = vunpack.c.l.b16 %v160
    %v357 = vunpack.c.l.b16 %v161
    %v358 = vunpack.c.l.b16 %v162
    %v359 = vunpack.c.l.b16 %v163
    %v360 = vunpack.c.l.b16 %v164
    %v361 = vunpack.c.l.b16 %v165
    %v362 = vunpack.c.l.b16 %v166
    %v363 = vunpack.c.l.b16 %v167
    %v364 = vunpack.c.l.b16 %v168
    %v365 = vunpack.c.l.b16 %v169
    %v366 = vunpack.c.l.b16 %v170
    %v367 = vunpack.c.l.b16 %v171
    %v368 = vunpack.c.l.b16 %v172
    %v369 = vunpack.c.l.b16 %v173
    %v370 = vunpack.c.l.b16 %v174
    %v371 = vunpack.c.l.b16 %v175
    %v372 = vunpack.c.l.b16 %v176
    %v373 = vunpack.c.l.b16 %v177
    %v374 = vunpack.c.l.b16 %v178
    %v375 = vunpack.c.l.b16 %v179
    %v376 = vunpack.c.l.b16 %v180
    %v377 = vunpack.c.l.b16 %v181
    %v378 = vunpack.c.l.b16 %v182
    %v379 = vunpack.c.l.b16 %v183
    %v380 = vunpack.c.l.b16 %v184
    %v381 = vunpack.c.l.b16 %v185
    %v382 = vunpack.c.l.b16 %v186
    %v383 = vunpack.c.l.b16 %v187
    %v384 = vunpack.c.l.b16 %v188
    %v385 = vunpack.c.l.b16 %v189
    %v386 = vunpack.c.l.b16 %v190
    %v387 = vunpack.c.l.b16 %v191
    %v388 = vunpack.c.l.b16 %v192
    %v389 = vunpack.c.l.b16 %v193
    %v390 = vunpack.c.l.b16 %v194
    %v391 = vunpack.c.l.b16 %v195
    %v392 = vunpack.c.l.b16 %v196
    %v393 = vunpack.c.l.b16 %v197
    %v394 = vunpack.c.l.b16 %v198
    %v395 = vunpack.c.l.b16 %v199
    %v396 = vunpack.c.l.b16 %v200
    %v397 = vunpack.c.l.b16 %v201
    %v398 = vunpack.c.l.b16 %v202
    %v399 = vunpack.c.l.b16 %v203
    %v400 = vunpack.c.l.b16 %v204
    %v401 = vunpack.c.l.b16 %v205
    %v402 = vunpack.c.l.b16 %v206
    %v403 = vunpack.c.l.b16 %v207
    %v404 = vunpack.c.l.b16 %v208
    %v405 = vunpack.c.l.b16 %v209
    %v406 = vunpack.c.l.b16 %v210
    %v407 = vunpack.c.l.b16 %v211
    %v408 = vunpack.c.l.b16 %v212
    %v409 = vunpack.c.l.b16 %v213
    %v410 = vunpack.c.l.b16 %v214
    %v411 = vunpack.c.l.b16 %v215
    %v412 = vunpack.c.l.b16 %v216
    %v413 = vunpack.c.l.b16 %v217
    %v414 = vunpack.c.l.b16 %v218
    %v415 = vunpack.c.l.b16 %v219
    %v416 = vpack.c.b16 %v337, %v336
    %v417 = vpack.c.b16 %v339, %v338
    %v418 = vpack.c.b16 %v341, %v340
    %v419 = vpack.c.b16 %v343, %v342
    %v420 = vpack.c.b16 %v345, %v344
    %v421 = vpack.c.b16 %v347, %v346
    %v422 = vpack.c.b16 %v349, %v348
    %v423 = vpack.c.b16 %v351, %v350
    %v424 = vpack.c.b16 %v353, %v352
    %v425 = vpack.c.b16 %v355, %v354
    %v426 = vpack.c.b16 %v357, %v356
    %v427 = vpack.c.b16 %v359, %v358
    %v428 = vpack.c.b16 %v361, %v360
    %v429 = vpack.c.b16 %v363, %v362
    %v430 = vpack.c.b16 %v365, %v364
    %v431 = vpack.c.b16 %v367, %v366
    %v432 = vpack.c.b16 %v369, %v368
    %v433 = vpack.c.b16 %v371, %v370
    %v434 = vpack.c.b16 %v373, %v372
    %v435 = vpack.c.b16 %v375, %v374
    %v436 = vpack.c.b16 %v377, %v376
    %v437 = vpack.c.b16 %v379, %v378
    %v438 = vpack.c.b16 %v381, %v380
    %v439 = vpack.c.b16 %v383, %v382
    %v440 = vpack.c.b16 %v385, %v384
    %v441 = vpack.c.b16 %v387, %v386
    %v442 = vpack.c.b16 %v389, %v388
    %v443 = vpack.c.b16 %v391, %v390
    %v444 = vpack.c.b16 %v393, %v392
    %v445 = vpack.c.b16 %v395, %v394
    %v446 = vpack.c.b16 %v397, %v396
    %v447 = vpack.c.b16 %v399, %v398
    %v448 = vpack.c.b16 %v401, %v400
    %v449 = vpack.c.b16 %v403, %v402
    %v450 = vpack.c.b16 %v405, %v404
    %v451 = vpack.c.b16 %v407, %v406
    %v452 = vpack.c.b16 %v409, %v408
    %v453 = vpack.c.b16 %v411, %v410
    %v454 = vpack.c.b16 %v413, %v412
    %v455 = vpack.c.b16 %v415, %v414
    %496 = vmatprep.subr.bf16.mxu0 0
    %497 = vmatpush1.bf16.msra.mxu0 %v416
    %498 = vmatprep.subr.bf16.mxu0 0
    %499 = vmatpush1.bf16.msra.mxu0 %v417
    %500 = vmatprep.subr.bf16.mxu0 0
    %501 = vmatpush1.bf16.msra.mxu0 %v418
    %502 = vmatprep.subr.bf16.mxu0 0
    %503 = vmatpush1.bf16.msra.mxu0 %v419
    %504 = vmatprep.subr.bf16.mxu0 0
    %505 = vmatpush1.bf16.msra.mxu0 %v420
    %506 = vmatprep.subr.bf16.mxu0 0
    %507 = vmatpush1.bf16.msra.mxu0 %v421
    %508 = vmatprep.subr.bf16.mxu0 0
    %509 = vmatpush1.bf16.msra.mxu0 %v422
    %510 = vmatprep.subr.bf16.mxu0 0
    %511 = vmatpush1.bf16.msra.mxu0 %v423
    %512 = vmatprep.subr.bf16.mxu0 0
    %513 = vmatpush1.bf16.msra.mxu0 %v424
    %514 = vmatprep.subr.bf16.mxu0 0
    %515 = vmatpush1.bf16.msra.mxu0 %v425
    %516 = vmatprep.subr.bf16.mxu0 0
    %517 = vmatpush1.bf16.msra.mxu0 %v426
    %518 = vmatprep.subr.bf16.mxu0 0
    %519 = vmatpush1.bf16.msra.mxu0 %v427
    %520 = vmatprep.subr.bf16.mxu0 0
    %521 = vmatpush1.bf16.msra.mxu0 %v428
    %522 = vmatprep.subr.bf16.mxu0 0
    %523 = vmatpush1.bf16.msra.mxu0 %v429
    %524 = vmatprep.subr.bf16.mxu0 0
    %525 = vmatpush1.bf16.msra.mxu0 %v430
    %526 = vmatprep.subr.bf16.mxu0 0
    %527 = vmatpush1.bf16.msra.mxu0 %v431
    %528 = vmatprep.mubr.bf16.mxu0 %v227
    %529 = vmatmul.mubr.bf16.gmra.mrb[0].mxu0 %v52
    %v530 = vpop.f32.mrb[0].mxu0
    %v531 = vadd.f32 %v225, %v530
    %v532 = vpop.f32.mrb[0].mxu0
    %v533 = vpop.f32.mrb[0].mxu0
    %v534 = vadd.f32 %v225, %v533
    %v535 = vpop.f32.mrb[0].mxu0
    %536 = vmatprep.mubr.bf16.mxu0 %v232
    %537 = vmatmul.mubr.bf16.gmra.mrb[0].mxu0 %v231
    %v538 = vpop.f32.mrb[0].mxu0
    %v539 = vadd.f32 %v225, %v538
    %v540 = vpop.f32.mrb[0].mxu0
    %v541 = vpop.f32.mrb[0].mxu0
    %v542 = vadd.f32 %v225, %v541
    %v543 = vpop.f32.mrb[0].mxu0
    %544 = vmatprep.mubr.bf16.mxu0 %v237
    %545 = vmatmul.mubr.bf16.gmra.mrb[0].mxu0 %v236
    %v546 = vpop.f32.mrb[0].mxu0
    %v547 = vadd.f32 %v225, %v546
    %v548 = vpop.f32.mrb[0].mxu0
    %v549 = vpop.f32.mrb[0].mxu0
    %v550 = vadd.f32 %v225, %v549
    %v551 = vpop.f32.mrb[0].mxu0
    %552 = vdwg.mxu0
    %553 = vmatprep.subr.bf16.mxu0 0
    %554 = vmatpush1.bf16.msra.mxu0 %v432
    %555 = vmatprep.subr.bf16.mxu0 0
    %556 = vmatpush1.bf16.msra.mxu0 %v433
    %557 = vmatprep.subr.bf16.mxu0 0
    %558 = vmatpush1.bf16.msra.mxu0 %v434
    %559 = vmatprep.subr.bf16.mxu0 0
    %560 = vmatpush1.bf16.msra.mxu0 %v435
    %561 = vmatprep.subr.bf16.mxu0 0
    %562 = vmatpush1.bf16.msra.mxu0 %v436
    %563 = vmatprep.subr.bf16.mxu0 0
    %564 = vmatpush1.bf16.msra.mxu0 %v437
    %565 = vmatprep.subr.bf16.mxu0 0
    %566 = vmatpush1.bf16.msra.mxu0 %v438
    %567 = vmatprep.subr.bf16.mxu0 0
    %568 = vmatpush1.bf16.msra.mxu0 %v439
    %569 = vmatprep.subr.bf16.mxu0 0
    %570 = vmatpush1.bf16.msra.mxu0 %v440
    %571 = vmatprep.subr.bf16.mxu0 0
    %572 = vmatpush1.bf16.msra.mxu0 %v441
    %573 = vmatprep.subr.bf16.mxu0 0
    %574 = vmatpush1.bf16.msra.mxu0 %v442
    %575 = vmatprep.subr.bf16.mxu0 0
    %576 = vmatpush1.bf16.msra.mxu0 %v443
    %577 = vmatprep.subr.bf16.mxu0 0
    %578 = vmatpush1.bf16.msra.mxu0 %v444
    %579 = vmatprep.subr.bf16.mxu0 0
    %580 = vmatpush1.bf16.msra.mxu0 %v445
    %581 = vmatprep.subr.bf16.mxu0 0
    %582 = vmatpush1.bf16.msra.mxu0 %v446
    %583 = vmatprep.subr.bf16.mxu0 0
    %584 = vmatpush1.bf16.msra.mxu0 %v447
    %585 = vmatprep.mubr.bf16.mxu0 %v229
    %586 = vmatmul.mubr.bf16.gmra.mrb[0].mxu0 %v228
    %v587 = vpop.f32.mrb[0].mxu0
    %v588 = vadd.f32 %v531, %v587
    %v589 = vpop.f32.mrb[0].mxu0
    %v590 = vpop.f32.mrb[0].mxu0
    %v591 = vadd.f32 %v534, %v590
    %v592 = vpop.f32.mrb[0].mxu0
    %593 = vmatprep.mubr.bf16.mxu0 %v234
    %594 = vmatmul.mubr.bf16.gmra.mrb[0].mxu0 %v233
    %v595 = vpop.f32.mrb[0].mxu0
    %v596 = vadd.f32 %v539, %v595
    %v597 = vpop.f32.mrb[0].mxu0
    %v598 = vpop.f32.mrb[0].mxu0
    %v599 = vadd.f32 %v542, %v598
    %v600 = vpop.f32.mrb[0].mxu0
    %601 = vmatprep.mubr.bf16.mxu0 %v239
    %602 = vmatmul.mubr.bf16.gmra.mrb[0].mxu0 %v238
    %v603 = vpop.f32.mrb[0].mxu0
    %v604 = vadd.f32 %v547, %v603
    %v605 = vpop.f32.mrb[0].mxu0
    %v606 = vpop.f32.mrb[0].mxu0
    %v607 = vadd.f32 %v550, %v606
    %v608 = vpop.f32.mrb[0].mxu0
    %609 = vdwg.mxu0
    %610 = vmatprep.subr.bf16.mxu0 0
    %611 = vmatpush1.bf16.msra.mxu0 %v448
    %612 = vmatprep.subr.bf16.mxu0 0
    %613 = vmatpush1.bf16.msra.mxu0 %v449
    %614 = vmatprep.subr.bf16.mxu0 0
    %615 = vmatpush1.bf16.msra.mxu0 %v450
    %616 = vmatprep.subr.bf16.mxu0 0
    %617 = vmatpush1.bf16.msra.mxu0 %v451
    %618 = vmatprep.subr.bf16.mxu0 0
    %619 = vmatpush1.bf16.msra.mxu0 %v452
    %620 = vmatprep.subr.bf16.mxu0 0
    %621 = vmatpush1.bf16.msra.mxu0 %v453
    %622 = vmatprep.subr.bf16.mxu0 0
    %623 = vmatpush1.bf16.msra.mxu0 %v454
    %624 = vmatprep.subr.bf16.mxu0 0
    %625 = vmatpush1.bf16.msra.mxu0 %v455
    %626 = vmatprep.subr.bf16.mxu0 0
    %627 = vmatpush1.bf16.msra.mxu0 0
    %628 = vmatprep.subr.bf16.mxu0 0
    %629 = vmatpush1.bf16.msra.mxu0 0
    %630 = vmatprep.subr.bf16.mxu0 0
    %631 = vmatpush1.bf16.msra.mxu0 0
    %632 = vmatprep.subr.bf16.mxu0 0
    %633 = vmatpush1.bf16.msra.mxu0 0
    %634 = vmatprep.subr.bf16.mxu0 0
    %635 = vmatpush1.bf16.msra.mxu0 0
    %636 = vmatprep.subr.bf16.mxu0 0
    %637 = vmatpush1.bf16.msra.mxu0 0
    %638 = vmatprep.subr.bf16.mxu0 0
    %639 = vmatpush1.bf16.msra.mxu0 0
    %640 = vmatprep.subr.bf16.mxu0 0
    %641 = vmatpush1.bf16.msra.mxu0 0
    %642 = vmatprep.mubr.bf16.mxu0 0
    %643 = vmatmul.mubr.bf16.gmra.mrb[0].mxu0 %v230
    %v644 = vpop.f32.mrb[0].mxu0
    %v645 = vadd.f32 %v588, %v644
    %v646 = vpop.f32.mrb[0].mxu0
    %v647 = vpop.f32.mrb[0].mxu0
    %v648 = vadd.f32 %v591, %v647
    %v649 = vpop.f32.mrb[0].mxu0
    %650 = vmatprep.mubr.bf16.mxu0 0
    %651 = vmatmul.mubr.bf16.gmra.mrb[0].mxu0 %v235
    %v652 = vpop.f32.mrb[0].mxu0
    %v653 = vadd.f32 %v596, %v652
    %v654 = vpop.f32.mrb[0].mxu0
    %v655 = vpop.f32.mrb[0].mxu0
    %v656 = vadd.f32 %v599, %v655
    %v657 = vpop.f32.mrb[0].mxu0
    %658 = vmatprep.mubr.bf16.mxu0 0
    %659 = vmatmul.mubr.bf16.gmra.mrb[0].mxu0 %v240
    %v660 = vpop.f32.mrb[0].mxu0
    %v661 = vadd.f32 %v604, %v660
    %v662 = vpop.f32.mrb[0].mxu0
    %v663 = vpop.f32.mrb[0].mxu0
    %v664 = vadd.f32 %v607, %v663
    %v665 = vpop.f32.mrb[0].mxu0
    %666 = vdwg.mxu0
    %v667 = vmax.f32 %v645, 0.0
    %v668 = vmax.f32 %v648, 0.0
    %v669 = vmax.f32 %v653, 0.0
    %v670 = vmax.f32 %v656, 0.0
    %v671 = vmax.f32 %v661, 0.0
    %v672 = vmax.f32 %v664, 0.0
    %v673 = vlaneseq
    %v674 = vshrl.u32 %v673, 7
    %v675 = vadd.s32 %v674, 8
    %v676 = vadd.s32 %v674, 16
    %vm677 = vcmp.ge.s32.totalorder %v674, 4
    %vm678 = vcmp.ge.s32.totalorder %v675, 4
    %vm679 = vcmp.ge.s32.totalorder %v676, 4
    %vm680 = vcmp.lt.s32.totalorder %v674, 20
    %vm681 = vcmp.lt.s32.totalorder %v675, 20
    %vm682 = vcmp.lt.s32.totalorder %v676, 20
    %vm683 = vmand %vm677, %vm680
    %vm684 = vmand %vm678, %vm681
    %vm685 = vmand %vm679, %vm682
    %v686 = vsel %vm683, 1, 0
    %v687 = vsel %vm684, 1, 0
    %v688 = vsel %vm685, 1, 0
    %vm689 = vcmp.eq.s32.totalorder %v686, 1
    %vm690 = vcmp.eq.s32.totalorder %v687, 1
    %vm691 = vcmp.eq.s32.totalorder %v688, 1
    %v692 = vsel %vm689, %v667, 0.0
    %v693 = vsel %vm690, %v668, 0.0
    %v694 = vsel %vm691, %v669, 0.0
    %v695 = vsel %vm689, %v670, 0.0
    %v696 = vsel %vm690, %v671, 0.0
    %v697 = vsel %vm691, %v672, 0.0
    %v698 = vpack.c.bf16 %v693, %v692
    %v699 = vpack.c.bf16 %v694, %v694
    %v700 = vpack.c.bf16 %v696, %v695
    %v701 = vpack.c.bf16 %v697, %v697
    %v703 = vshrl.u32 %v698, 16
    %v705 = vshll.u32 %v698, 16
    %v707 = vrot.slane %v705, 1
    %v708 = vor.u32 %v703, %v707
    %v710 = vshll.u32 %v699, 16
    %v712 = vrot.slane %v710, 1
    %v713 = vsel %vm56, %v708, %v712
    %v714 = vshrl.u32 %v699, 16
    %v716 = vor.u32 %v714, %v712
    %v718 = vshrl.u32 %v700, 16
    %v720 = vshll.u32 %v700, 16
    %v722 = vrot.slane %v720, 1
    %v723 = vor.u32 %v718, %v722
    %v725 = vshll.u32 %v701, 16
    %v727 = vrot.slane %v725, 1
    %v728 = vsel %vm56, %v723, %v727
    %v729 = vshrl.u32 %v701, 16
    %v731 = vor.u32 %v729, %v727
    %v736 = vrot.slane %v698, 1
    %v737 = vrot.slane %v699, 1
    %v738 = vsel %vm87, %v736, %v737
    %v739 = vrot.slane %v700, 1
    %v740 = vrot.slane %v701, 1
    %v741 = vsel %vm87, %v739, %v740
    %v742 = vrot.slane %v703, 1
    %v743 = vrot.slane %v705, 2
    %v744 = vor.u32 %v742, %v743
    %v745 = vrot.slane %v714, 1
    %v746 = vrot.slane %v710, 2
    %v747 = vor.u32 %v745, %v746
    %v748 = vsel %vm94, %v744, %v747
    %v749 = vrot.slane %v718, 1
    %v750 = vrot.slane %v720, 2
    %v751 = vor.u32 %v749, %v750
    %v752 = vrot.slane %v729, 1
    %v753 = vrot.slane %v725, 2
    %v754 = vor.u32 %v752, %v753
    %v755 = vsel %vm94, %v751, %v754
    %v756 = vrot.slane %v698, 2
    %v757 = vrot.slane %v699, 2
    %v758 = vsel %vm109, %v756, %v757
    %v759 = vrot.slane %v700, 2
    %v760 = vrot.slane %v701, 2
    %v761 = vsel %vm109, %v759, %v760
    %v762 = vrot.slane %v713, 1
    %v763 = vrot.slane %v716, 1
    %v764 = vsel %vm87, %v762, %v763
    %v765 = vrot.slane %v738, 1
    %v766 = vrot.slane %v737, 1
    %v767 = vsel %vm87, %v765, %v766
    %v768 = vrot.slane %v748, 1
    %v769 = vrot.slane %v747, 1
    %v770 = vsel %vm87, %v768, %v769
    %v771 = vrot.slane %v758, 1
    %v772 = vrot.slane %v757, 1
    %v773 = vsel %vm87, %v771, %v772
    %v774 = vrot.slane %v728, 1
    %v775 = vrot.slane %v731, 1
    %v776 = vsel %vm87, %v774, %v775
    %v777 = vrot.slane %v741, 1
    %v778 = vrot.slane %v740, 1
    %v779 = vsel %vm87, %v777, %v778
    %v780 = vrot.slane %v755, 1
    %v781 = vrot.slane %v754, 1
    %v782 = vsel %vm87, %v780, %v781
    %v783 = vrot.slane %v761, 1
    %v784 = vrot.slane %v760, 1
    %v785 = vsel %vm87, %v783, %v784
    %v796 = vld [vmem:[%s3] sm:$0xff]
    %v797 = vld [vmem:[%s3 + $0x8] sm:$0xff]
    %v798 = vld [vmem:[%s3 + $0x10] sm:$0xff]
    %v799 = vld [vmem:[%s3 + $0x18] sm:$0xff]
    %v800 = vld [vmem:[%s3 + $0x20] sm:$0xff]
    %v801 = vld [vmem:[%s3 + $0x28] sm:$0xff]
    %v802 = vld [vmem:[%s3 + $0x30] sm:$0xff]
    %v803 = vld [vmem:[%s3 + $0x38] sm:$0xff]
    %v804 = vld [vmem:[%s3 + $0x40] sm:$0xff]
    %v805 = vld [vmem:[%s3 + $0x48] sm:$0xff]
    %v806 = vld [vmem:[%s3 + $0x50] sm:$0xff]
    %v807 = vld [vmem:[%s3 + $0x58] sm:$0xff]
    %v808 = vld [vmem:[%s3 + $0x60] sm:$0xff]
    %v809 = vld [vmem:[%s3 + $0x68] sm:$0xff]
    %v810 = vld [vmem:[%s3 + $0x70] sm:$0xff]
    %v811 = vld [vmem:[%s3 + $0x78] sm:$0xff]
    %v812 = vld [vmem:[%s3 + $0x80] sm:$0xff]
    %v813 = vld [vmem:[%s3 + $0x88] sm:$0xff]
    %v814 = vld [vmem:[%s3 + $0x90] sm:$0xff]
    %v815 = vld [vmem:[%s3 + $0x98] sm:$0xff]
    %v816 = vld [vmem:[%s3 + $0xa0] sm:$0xff]
    %v817 = vld [vmem:[%s3 + $0xa8] sm:$0xff]
    %v818 = vld [vmem:[%s3 + $0xb0] sm:$0xff]
    %v819 = vld [vmem:[%s3 + $0xb8] sm:$0xff]
    %v820 = vld [vmem:[%s3 + $0xc0] sm:$0xff]
    %v821 = vld [vmem:[%s3 + $0xc8] sm:$0xff]
    %v822 = vld [vmem:[%s3 + $0xd0] sm:$0xff]
    %v823 = vld [vmem:[%s3 + $0xd8] sm:$0xff]
    %v824 = vld [vmem:[%s3 + $0xe0] sm:$0xff]
    %v825 = vld [vmem:[%s3 + $0xe8] sm:$0xff]
    %v826 = vld [vmem:[%s3 + $0xf0] sm:$0xff]
    %v827 = vld [vmem:[%s3 + $0xf8] sm:$0xff]
    %v828 = vld [vmem:[%s3 + $0x100] sm:$0xff]
    %v829 = vld [vmem:[%s3 + $0x108] sm:$0xff]
    %v830 = vld [vmem:[%s3 + $0x110] sm:$0xff]
    %v831 = vld [vmem:[%s3 + $0x118] sm:$0xff]
    %v832 = vld [vmem:[%s3 + $0x120] sm:$0xff]
    %v833 = vld [vmem:[%s3 + $0x128] sm:$0xff]
    %v834 = vld [vmem:[%s3 + $0x130] sm:$0xff]
    %v835 = vld [vmem:[%s3 + $0x138] sm:$0xff]
    %v836 = vld [vmem:[%s3 + $0x140] sm:$0xff]
    %v837 = vld [vmem:[%s3 + $0x148] sm:$0xff]
    %v838 = vld [vmem:[%s3 + $0x150] sm:$0xff]
    %v839 = vld [vmem:[%s3 + $0x158] sm:$0xff]
    %v840 = vld [vmem:[%s3 + $0x160] sm:$0xff]
    %v841 = vld [vmem:[%s3 + $0x168] sm:$0xff]
    %v842 = vld [vmem:[%s3 + $0x170] sm:$0xff]
    %v843 = vld [vmem:[%s3 + $0x178] sm:$0xff]
    %v844 = vld [vmem:[%s3 + $0x180] sm:$0xff]
    %v845 = vld [vmem:[%s3 + $0x188] sm:$0xff]
    %v846 = vld [vmem:[%s3 + $0x190] sm:$0xff]
    %v847 = vld [vmem:[%s3 + $0x198] sm:$0xff]
    %v848 = vld [vmem:[%s3 + $0x1a0] sm:$0xff]
    %v849 = vld [vmem:[%s3 + $0x1a8] sm:$0xff]
    %v850 = vld [vmem:[%s3 + $0x1b0] sm:$0xff]
    %v851 = vld [vmem:[%s3 + $0x1b8] sm:$0xff]
    %v852 = vld [vmem:[%s3 + $0x1c0] sm:$0xff]
    %v853 = vld [vmem:[%s3 + $0x1c8] sm:$0xff]
    %v854 = vld [vmem:[%s3 + $0x1d0] sm:$0xff]
    %v855 = vld [vmem:[%s3 + $0x1d8] sm:$0xff]
    %v856 = vld [vmem:[%s3 + $0x1e0] sm:$0xff]
    %v857 = vld [vmem:[%s3 + $0x1e8] sm:$0xff]
    %v858 = vld [vmem:[%s3 + $0x1f0] sm:$0xff]
    %v859 = vld [vmem:[%s3 + $0x1f8] sm:$0xff]
    %v860 = vld [vmem:[%s3 + $0x200] sm:$0xff]
    %v861 = vld [vmem:[%s3 + $0x208] sm:$0xff]
    %v862 = vld [vmem:[%s3 + $0x210] sm:$0xff]
    %v863 = vld [vmem:[%s3 + $0x218] sm:$0xff]
    %v864 = vld [vmem:[%s3 + $0x220] sm:$0xff]
    %v865 = vld [vmem:[%s3 + $0x228] sm:$0xff]
    %v866 = vld [vmem:[%s3 + $0x230] sm:$0xff]
    %v867 = vld [vmem:[%s3 + $0x238] sm:$0xff]
    %v868 = vld [vmem:[%s3 + $0x240] sm:$0xff]
    %v869 = vld [vmem:[%s3 + $0x248] sm:$0xff]
    %v870 = vld [vmem:[%s3 + $0x250] sm:$0xff]
    %v871 = vld [vmem:[%s3 + $0x258] sm:$0xff]
    %v872 = vld [vmem:[%s3 + $0x260] sm:$0xff]
    %v873 = vld [vmem:[%s3 + $0x268] sm:$0xff]
    %v874 = vld [vmem:[%s3 + $0x270] sm:$0xff]
    %v875 = vld [vmem:[%s3 + $0x278] sm:$0xff]
    %v876 = vld [vmem:[%s4] sm:$0x3]
    %v878 = vlaneseq
    %v879 = vshrl.u32 %v878, 7
    %v880 = vsub.s32 0, %v879
    %v881 = vrot.slane %v876, %v880
    %v882 = vlaneseq
    %v883 = vshrl.u32 %v882, 7
    %v884 = vsub.s32 1, %v883
    %v885 = vrot.slane %v876, %v884
    %v968 = vunpack.c.l.b16 %v796
    %v969 = vunpack.c.h.b16 %v796
    %v970 = vunpack.c.l.b16 %v797
    %v971 = vunpack.c.h.b16 %v797
    %v972 = vunpack.c.l.b16 %v798
    %v973 = vunpack.c.h.b16 %v798
    %v974 = vunpack.c.l.b16 %v799
    %v975 = vunpack.c.h.b16 %v799
    %v976 = vunpack.c.l.b16 %v800
    %v977 = vunpack.c.h.b16 %v800
    %v978 = vunpack.c.l.b16 %v801
    %v979 = vunpack.c.h.b16 %v801
    %v980 = vunpack.c.l.b16 %v802
    %v981 = vunpack.c.h.b16 %v802
    %v982 = vunpack.c.l.b16 %v803
    %v983 = vunpack.c.h.b16 %v803
    %v984 = vunpack.c.l.b16 %v804
    %v985 = vunpack.c.h.b16 %v804
    %v986 = vunpack.c.l.b16 %v805
    %v987 = vunpack.c.h.b16 %v805
    %v988 = vunpack.c.l.b16 %v806
    %v989 = vunpack.c.h.b16 %v806
    %v990 = vunpack.c.l.b16 %v807
    %v991 = vunpack.c.h.b16 %v807
    %v992 = vunpack.c.l.b16 %v808
    %v993 = vunpack.c.h.b16 %v808
    %v994 = vunpack.c.l.b16 %v809
    %v995 = vunpack.c.h.b16 %v809
    %v996 = vunpack.c.l.b16 %v810
    %v997 = vunpack.c.h.b16 %v810
    %v998 = vunpack.c.l.b16 %v811
    %v999 = vunpack.c.h.b16 %v811
    %v1000 = vunpack.c.l.b16 %v812
    %v1001 = vunpack.c.h.b16 %v812
    %v1002 = vunpack.c.l.b16 %v813
    %v1003 = vunpack.c.h.b16 %v813
    %v1004 = vunpack.c.l.b16 %v814
    %v1005 = vunpack.c.h.b16 %v814
    %v1006 = vunpack.c.l.b16 %v815
    %v1007 = vunpack.c.h.b16 %v815
    %v1008 = vunpack.c.l.b16 %v816
    %v1009 = vunpack.c.h.b16 %v816
    %v1010 = vunpack.c.l.b16 %v817
    %v1011 = vunpack.c.h.b16 %v817
    %v1012 = vunpack.c.l.b16 %v818
    %v1013 = vunpack.c.h.b16 %v818
    %v1014 = vunpack.c.l.b16 %v819
    %v1015 = vunpack.c.h.b16 %v819
    %v1016 = vunpack.c.l.b16 %v820
    %v1017 = vunpack.c.h.b16 %v820
    %v1018 = vunpack.c.l.b16 %v821
    %v1019 = vunpack.c.h.b16 %v821
    %v1020 = vunpack.c.l.b16 %v822
    %v1021 = vunpack.c.h.b16 %v822
    %v1022 = vunpack.c.l.b16 %v823
    %v1023 = vunpack.c.h.b16 %v823
    %v1024 = vunpack.c.l.b16 %v824
    %v1025 = vunpack.c.h.b16 %v824
    %v1026 = vunpack.c.l.b16 %v825
    %v1027 = vunpack.c.h.b16 %v825
    %v1028 = vunpack.c.l.b16 %v826
    %v1029 = vunpack.c.h.b16 %v826
    %v1030 = vunpack.c.l.b16 %v827
    %v1031 = vunpack.c.h.b16 %v827
    %v1032 = vunpack.c.l.b16 %v828
    %v1033 = vunpack.c.h.b16 %v828
    %v1034 = vunpack.c.l.b16 %v829
    %v1035 = vunpack.c.h.b16 %v829
    %v1036 = vunpack.c.l.b16 %v830
    %v1037 = vunpack.c.h.b16 %v830
    %v1038 = vunpack.c.l.b16 %v831
    %v1039 = vunpack.c.h.b16 %v831
    %v1040 = vunpack.c.l.b16 %v832
    %v1041 = vunpack.c.h.b16 %v832
    %v1042 = vunpack.c.l.b16 %v833
    %v1043 = vunpack.c.h.b16 %v833
    %v1044 = vunpack.c.l.b16 %v834
    %v1045 = vunpack.c.h.b16 %v834
    %v1046 = vunpack.c.l.b16 %v835
    %v1047 = vunpack.c.h.b16 %v835
    %v1048 = vunpack.c.l.b16 %v836
    %v1049 = vunpack.c.h.b16 %v836
    %v1050 = vunpack.c.l.b16 %v837
    %v1051 = vunpack.c.h.b16 %v837
    %v1052 = vunpack.c.l.b16 %v838
    %v1053 = vunpack.c.h.b16 %v838
    %v1054 = vunpack.c.l.b16 %v839
    %v1055 = vunpack.c.h.b16 %v839
    %v1056 = vunpack.c.l.b16 %v840
    %v1057 = vunpack.c.h.b16 %v840
    %v1058 = vunpack.c.l.b16 %v841
    %v1059 = vunpack.c.h.b16 %v841
    %v1060 = vunpack.c.l.b16 %v842
    %v1061 = vunpack.c.h.b16 %v842
    %v1062 = vunpack.c.l.b16 %v843
    %v1063 = vunpack.c.h.b16 %v843
    %v1064 = vunpack.c.l.b16 %v844
    %v1065 = vunpack.c.h.b16 %v844
    %v1066 = vunpack.c.l.b16 %v845
    %v1067 = vunpack.c.h.b16 %v845
    %v1068 = vunpack.c.l.b16 %v846
    %v1069 = vunpack.c.h.b16 %v846
    %v1070 = vunpack.c.l.b16 %v847
    %v1071 = vunpack.c.h.b16 %v847
    %v1072 = vunpack.c.l.b16 %v848
    %v1073 = vunpack.c.h.b16 %v848
    %v1074 = vunpack.c.l.b16 %v849
    %v1075 = vunpack.c.h.b16 %v849
    %v1076 = vunpack.c.l.b16 %v850
    %v1077 = vunpack.c.h.b16 %v850
    %v1078 = vunpack.c.l.b16 %v851
    %v1079 = vunpack.c.h.b16 %v851
    %v1080 = vunpack.c.l.b16 %v852
    %v1081 = vunpack.c.h.b16 %v852
    %v1082 = vunpack.c.l.b16 %v853
    %v1083 = vunpack.c.h.b16 %v853
    %v1084 = vunpack.c.l.b16 %v854
    %v1085 = vunpack.c.h.b16 %v854
    %v1086 = vunpack.c.l.b16 %v855
    %v1087 = vunpack.c.h.b16 %v855
    %v1088 = vunpack.c.l.b16 %v856
    %v1089 = vunpack.c.h.b16 %v856
    %v1090 = vunpack.c.l.b16 %v857
    %v1091 = vunpack.c.h.b16 %v857
    %v1092 = vunpack.c.l.b16 %v858
    %v1093 = vunpack.c.h.b16 %v858
    %v1094 = vunpack.c.l.b16 %v859
    %v1095 = vunpack.c.h.b16 %v859
    %v1096 = vunpack.c.l.b16 %v860
    %v1097 = vunpack.c.h.b16 %v860
    %v1098 = vunpack.c.l.b16 %v861
    %v1099 = vunpack.c.h.b16 %v861
    %v1100 = vunpack.c.l.b16 %v862
    %v1101 = vunpack.c.h.b16 %v862
    %v1102 = vunpack.c.l.b16 %v863
    %v1103 = vunpack.c.h.b16 %v863
    %v1104 = vunpack.c.l.b16 %v864
    %v1105 = vunpack.c.h.b16 %v864
    %v1106 = vunpack.c.l.b16 %v865
    %v1107 = vunpack.c.h.b16 %v865
    %v1108 = vunpack.c.l.b16 %v866
    %v1109 = vunpack.c.h.b16 %v866
    %v1110 = vunpack.c.l.b16 %v867
    %v1111 = vunpack.c.h.b16 %v867
    %v1112 = vunpack.c.l.b16 %v868
    %v1113 = vunpack.c.h.b16 %v868
    %v1114 = vunpack.c.l.b16 %v869
    %v1115 = vunpack.c.h.b16 %v869
    %v1116 = vunpack.c.l.b16 %v870
    %v1117 = vunpack.c.h.b16 %v870
    %v1118 = vunpack.c.l.b16 %v871
    %v1119 = vunpack.c.h.b16 %v871
    %v1120 = vunpack.c.l.b16 %v872
    %v1121 = vunpack.c.h.b16 %v872
    %v1122 = vunpack.c.l.b16 %v873
    %v1123 = vunpack.c.h.b16 %v873
    %v1124 = vunpack.c.l.b16 %v874
    %v1125 = vunpack.c.h.b16 %v874
    %v1126 = vunpack.c.l.b16 %v875
    %v1127 = vunpack.c.h.b16 %v875
    %v1128 = vpack.c.b16 %v970, %v968
    %v1129 = vpack.c.b16 %v971, %v969
    %v1130 = vpack.c.b16 %v974, %v972
    %v1131 = vpack.c.b16 %v975, %v973
    %v1132 = vpack.c.b16 %v978, %v976
    %v1133 = vpack.c.b16 %v979, %v977
    %v1134 = vpack.c.b16 %v982, %v980
    %v1135 = vpack.c.b16 %v983, %v981
    %v1136 = vpack.c.b16 %v986, %v984
    %v1137 = vpack.c.b16 %v987, %v985
    %v1138 = vpack.c.b16 %v990, %v988
    %v1139 = vpack.c.b16 %v991, %v989
    %v1140 = vpack.c.b16 %v994, %v992
    %v1141 = vpack.c.b16 %v995, %v993
    %v1142 = vpack.c.b16 %v998, %v996
    %v1143 = vpack.c.b16 %v999, %v997
    %v1144 = vpack.c.b16 %v1002, %v1000
    %v1145 = vpack.c.b16 %v1003, %v1001
    %v1146 = vpack.c.b16 %v1006, %v1004
    %v1147 = vpack.c.b16 %v1007, %v1005
    %v1148 = vpack.c.b16 %v1010, %v1008
    %v1149 = vpack.c.b16 %v1011, %v1009
    %v1150 = vpack.c.b16 %v1014, %v1012
    %v1151 = vpack.c.b16 %v1015, %v1013
    %v1152 = vpack.c.b16 %v1018, %v1016
    %v1153 = vpack.c.b16 %v1019, %v1017
    %v1154 = vpack.c.b16 %v1022, %v1020
    %v1155 = vpack.c.b16 %v1023, %v1021
    %v1156 = vpack.c.b16 %v1026, %v1024
    %v1157 = vpack.c.b16 %v1027, %v1025
    %v1158 = vpack.c.b16 %v1030, %v1028
    %v1159 = vpack.c.b16 %v1031, %v1029
    %v1160 = vpack.c.b16 %v1034, %v1032
    %v1161 = vpack.c.b16 %v1035, %v1033
    %v1162 = vpack.c.b16 %v1038, %v1036
    %v1163 = vpack.c.b16 %v1039, %v1037
    %v1164 = vpack.c.b16 %v1042, %v1040
    %v1165 = vpack.c.b16 %v1043, %v1041
    %v1166 = vpack.c.b16 %v1046, %v1044
    %v1167 = vpack.c.b16 %v1047, %v1045
    %v1168 = vpack.c.b16 %v1050, %v1048
    %v1169 = vpack.c.b16 %v1051, %v1049
    %v1170 = vpack.c.b16 %v1054, %v1052
    %v1171 = vpack.c.b16 %v1055, %v1053
    %v1172 = vpack.c.b16 %v1058, %v1056
    %v1173 = vpack.c.b16 %v1059, %v1057
    %v1174 = vpack.c.b16 %v1062, %v1060
    %v1175 = vpack.c.b16 %v1063, %v1061
    %v1176 = vpack.c.b16 %v1066, %v1064
    %v1177 = vpack.c.b16 %v1067, %v1065
    %v1178 = vpack.c.b16 %v1070, %v1068
    %v1179 = vpack.c.b16 %v1071, %v1069
    %v1180 = vpack.c.b16 %v1074, %v1072
    %v1181 = vpack.c.b16 %v1075, %v1073
    %v1182 = vpack.c.b16 %v1078, %v1076
    %v1183 = vpack.c.b16 %v1079, %v1077
    %v1184 = vpack.c.b16 %v1082, %v1080
    %v1185 = vpack.c.b16 %v1083, %v1081
    %v1186 = vpack.c.b16 %v1086, %v1084
    %v1187 = vpack.c.b16 %v1087, %v1085
    %v1188 = vpack.c.b16 %v1090, %v1088
    %v1189 = vpack.c.b16 %v1091, %v1089
    %v1190 = vpack.c.b16 %v1094, %v1092
    %v1191 = vpack.c.b16 %v1095, %v1093
    %v1192 = vpack.c.b16 %v1098, %v1096
    %v1193 = vpack.c.b16 %v1099, %v1097
    %v1194 = vpack.c.b16 %v1102, %v1100
    %v1195 = vpack.c.b16 %v1103, %v1101
    %v1196 = vpack.c.b16 %v1106, %v1104
    %v1197 = vpack.c.b16 %v1107, %v1105
    %v1198 = vpack.c.b16 %v1110, %v1108
    %v1199 = vpack.c.b16 %v1111, %v1109
    %v1200 = vpack.c.b16 %v1114, %v1112
    %v1201 = vpack.c.b16 %v1115, %v1113
    %v1202 = vpack.c.b16 %v1118, %v1116
    %v1203 = vpack.c.b16 %v1119, %v1117
    %v1204 = vpack.c.b16 %v1122, %v1120
    %v1205 = vpack.c.b16 %v1123, %v1121
    %v1206 = vpack.c.b16 %v1126, %v1124
    %v1207 = vpack.c.b16 %v1127, %v1125
    %1288 = vmatprep.subr.bf16.mxu0 %v1129
    %1289 = vmatpush1.bf16.msra.mxu0 %v1128
    %1290 = vmatprep.subr.bf16.mxu0 %v1131
    %1291 = vmatpush1.bf16.msra.mxu0 %v1130
    %1292 = vmatprep.subr.bf16.mxu0 %v1133
    %1293 = vmatpush1.bf16.msra.mxu0 %v1132
    %1294 = vmatprep.subr.bf16.mxu0 %v1135
    %1295 = vmatpush1.bf16.msra.mxu0 %v1134
    %1296 = vmatprep.subr.bf16.mxu0 %v1137
    %1297 = vmatpush1.bf16.msra.mxu0 %v1136
    %1298 = vmatprep.subr.bf16.mxu0 %v1139
    %1299 = vmatpush1.bf16.msra.mxu0 %v1138
    %1300 = vmatprep.subr.bf16.mxu0 %v1141
    %1301 = vmatpush1.bf16.msra.mxu0 %v1140
    %1302 = vmatprep.subr.bf16.mxu0 %v1143
    %1303 = vmatpush1.bf16.msra.mxu0 %v1142
    %1304 = vmatprep.subr.bf16.mxu0 %v1145
    %1305 = vmatpush1.bf16.msra.mxu0 %v1144
    %1306 = vmatprep.subr.bf16.mxu0 %v1147
    %1307 = vmatpush1.bf16.msra.mxu0 %v1146
    %1308 = vmatprep.subr.bf16.mxu0 %v1149
    %1309 = vmatpush1.bf16.msra.mxu0 %v1148
    %1310 = vmatprep.subr.bf16.mxu0 %v1151
    %1311 = vmatpush1.bf16.msra.mxu0 %v1150
    %1312 = vmatprep.subr.bf16.mxu0 %v1153
    %1313 = vmatpush1.bf16.msra.mxu0 %v1152
    %1314 = vmatprep.subr.bf16.mxu0 %v1155
    %1315 = vmatpush1.bf16.msra.mxu0 %v1154
    %1316 = vmatprep.subr.bf16.mxu0 %v1157
    %1317 = vmatpush1.bf16.msra.mxu0 %v1156
    %1318 = vmatprep.subr.bf16.mxu0 %v1159
    %1319 = vmatpush1.bf16.msra.mxu0 %v1158
    %1320 = vmatprep.mubr.bf16.mxu0 %v764
    %1321 = vmatmul.mubr.bf16.gmra.mrb[0].mxu0 %v738
    %v1322 = vpop.f32.mrb[0].mxu0
    %v1323 = vadd.f32 %v881, %v1322
    %v1324 = vpop.f32.mrb[0].mxu0
    %v1325 = vadd.f32 %v885, %v1324
    %v1326 = vpop.f32.mrb[0].mxu0
    %v1327 = vadd.f32 %v881, %v1326
    %v1328 = vpop.f32.mrb[0].mxu0
    %v1329 = vadd.f32 %v885, %v1328
    %1330 = vmatprep.mubr.bf16.mxu0 %v776
    %1331 = vmatmul.mubr.bf16.gmra.mrb[0].mxu0 %v741
    %v1332 = vpop.f32.mrb[0].mxu0
    %v1333 = vadd.f32 %v881, %v1332
    %v1334 = vpop.f32.mrb[0].mxu0
    %v1335 = vadd.f32 %v885, %v1334
    %v1336 = vpop.f32.mrb[0].mxu0
    %v1337 = vadd.f32 %v881, %v1336
    %v1338 = vpop.f32.mrb[0].mxu0
    %v1339 = vadd.f32 %v885, %v1338
    %1340 = vdwg.mxu0
    %1341 = vmatprep.subr.bf16.mxu0 %v1161
    %1342 = vmatpush1.bf16.msra.mxu0 %v1160
    %1343 = vmatprep.subr.bf16.mxu0 %v1163
    %1344 = vmatpush1.bf16.msra.mxu0 %v1162
    %1345 = vmatprep.subr.bf16.mxu0 %v1165
    %1346 = vmatpush1.bf16.msra.mxu0 %v1164
    %1347 = vmatprep.subr.bf16.mxu0 %v1167
    %1348 = vmatpush1.bf16.msra.mxu0 %v1166
    %1349 = vmatprep.subr.bf16.mxu0 %v1169
    %1350 = vmatpush1.bf16.msra.mxu0 %v1168
    %1351 = vmatprep.subr.bf16.mxu0 %v1171
    %1352 = vmatpush1.bf16.msra.mxu0 %v1170
    %1353 = vmatprep.subr.bf16.mxu0 %v1173
    %1354 = vmatpush1.bf16.msra.mxu0 %v1172
    %1355 = vmatprep.subr.bf16.mxu0 %v1175
    %1356 = vmatpush1.bf16.msra.mxu0 %v1174
    %1357 = vmatprep.subr.bf16.mxu0 %v1177
    %1358 = vmatpush1.bf16.msra.mxu0 %v1176
    %1359 = vmatprep.subr.bf16.mxu0 %v1179
    %1360 = vmatpush1.bf16.msra.mxu0 %v1178
    %1361 = vmatprep.subr.bf16.mxu0 %v1181
    %1362 = vmatpush1.bf16.msra.mxu0 %v1180
    %1363 = vmatprep.subr.bf16.mxu0 %v1183
    %1364 = vmatpush1.bf16.msra.mxu0 %v1182
    %1365 = vmatprep.subr.bf16.mxu0 %v1185
    %1366 = vmatpush1.bf16.msra.mxu0 %v1184
    %1367 = vmatprep.subr.bf16.mxu0 %v1187
    %1368 = vmatpush1.bf16.msra.mxu0 %v1186
    %1369 = vmatprep.subr.bf16.mxu0 %v1189
    %1370 = vmatpush1.bf16.msra.mxu0 %v1188
    %1371 = vmatprep.subr.bf16.mxu0 %v1191
    %1372 = vmatpush1.bf16.msra.mxu0 %v1190
    %1373 = vmatprep.mubr.bf16.mxu0 %v770
    %1374 = vmatmul.mubr.bf16.gmra.mrb[0].mxu0 %v767
    %v1375 = vpop.f32.mrb[0].mxu0
    %v1376 = vadd.f32 %v1323, %v1375
    %v1377 = vpop.f32.mrb[0].mxu0
    %v1378 = vadd.f32 %v1325, %v1377
    %v1379 = vpop.f32.mrb[0].mxu0
    %v1380 = vadd.f32 %v1327, %v1379
    %v1381 = vpop.f32.mrb[0].mxu0
    %v1382 = vadd.f32 %v1329, %v1381
    %1383 = vmatprep.mubr.bf16.mxu0 %v782
    %1384 = vmatmul.mubr.bf16.gmra.mrb[0].mxu0 %v779
    %v1385 = vpop.f32.mrb[0].mxu0
    %v1386 = vadd.f32 %v1333, %v1385
    %v1387 = vpop.f32.mrb[0].mxu0
    %v1388 = vadd.f32 %v1335, %v1387
    %v1389 = vpop.f32.mrb[0].mxu0
    %v1390 = vadd.f32 %v1337, %v1389
    %v1391 = vpop.f32.mrb[0].mxu0
    %v1392 = vadd.f32 %v1339, %v1391
    %1393 = vdwg.mxu0
    %1394 = vmatprep.subr.bf16.mxu0 %v1193
    %1395 = vmatpush1.bf16.msra.mxu0 %v1192
    %1396 = vmatprep.subr.bf16.mxu0 %v1195
    %1397 = vmatpush1.bf16.msra.mxu0 %v1194
    %1398 = vmatprep.subr.bf16.mxu0 %v1197
    %1399 = vmatpush1.bf16.msra.mxu0 %v1196
    %1400 = vmatprep.subr.bf16.mxu0 %v1199
    %1401 = vmatpush1.bf16.msra.mxu0 %v1198
    %1402 = vmatprep.subr.bf16.mxu0 %v1201
    %1403 = vmatpush1.bf16.msra.mxu0 %v1200
    %1404 = vmatprep.subr.bf16.mxu0 %v1203
    %1405 = vmatpush1.bf16.msra.mxu0 %v1202
    %1406 = vmatprep.subr.bf16.mxu0 %v1205
    %1407 = vmatpush1.bf16.msra.mxu0 %v1204
    %1408 = vmatprep.subr.bf16.mxu0 %v1207
    %1409 = vmatpush1.bf16.msra.mxu0 %v1206
    %1410 = vmatprep.subr.bf16.mxu0 0
    %1411 = vmatpush1.bf16.msra.mxu0 0
    %1412 = vmatprep.subr.bf16.mxu0 0
    %1413 = vmatpush1.bf16.msra.mxu0 0
    %1414 = vmatprep.subr.bf16.mxu0 0
    %1415 = vmatpush1.bf16.msra.mxu0 0
    %1416 = vmatprep.subr.bf16.mxu0 0
    %1417 = vmatpush1.bf16.msra.mxu0 0
    %1418 = vmatprep.subr.bf16.mxu0 0
    %1419 = vmatpush1.bf16.msra.mxu0 0
    %1420 = vmatprep.subr.bf16.mxu0 0
    %1421 = vmatpush1.bf16.msra.mxu0 0
    %1422 = vmatprep.subr.bf16.mxu0 0
    %1423 = vmatpush1.bf16.msra.mxu0 0
    %1424 = vmatprep.subr.bf16.mxu0 0
    %1425 = vmatpush1.bf16.msra.mxu0 0
    %1426 = vmatprep.mubr.bf16.mxu0 0
    %1427 = vmatmul.mubr.bf16.gmra.mrb[0].mxu0 %v773
    %v1428 = vpop.f32.mrb[0].mxu0
    %v1429 = vadd.f32 %v1376, %v1428
    %v1430 = vpop.f32.mrb[0].mxu0
    %v1431 = vadd.f32 %v1378, %v1430
    %v1432 = vpop.f32.mrb[0].mxu0
    %v1433 = vadd.f32 %v1380, %v1432
    %v1434 = vpop.f32.mrb[0].mxu0
    %v1435 = vadd.f32 %v1382, %v1434
    %1436 = vmatprep.mubr.bf16.mxu0 0
    %1437 = vmatmul.mubr.bf16.gmra.mrb[0].mxu0 %v785
    %v1438 = vpop.f32.mrb[0].mxu0
    %v1439 = vadd.f32 %v1386, %v1438
    %v1440 = vpop.f32.mrb[0].mxu0
    %v1441 = vadd.f32 %v1388, %v1440
    %v1442 = vpop.f32.mrb[0].mxu0
    %v1443 = vadd.f32 %v1390, %v1442
    %v1444 = vpop.f32.mrb[0].mxu0
    %v1445 = vadd.f32 %v1392, %v1444
    %1446 = vdwg.mxu0
    %v1447 = vmax.f32 %v1429, 0.0
    %v1448 = vmax.f32 %v1431, 0.0
    %v1449 = vmax.f32 %v1433, 0.0
    %v1450 = vmax.f32 %v1435, 0.0
    %v1451 = vmax.f32 %v1439, 0.0
    %v1452 = vmax.f32 %v1441, 0.0
    %v1453 = vmax.f32 %v1443, 0.0
    %v1454 = vmax.f32 %v1445, 0.0
    %v1455 = vadd.f32 %v1447, %v1449
    %v1456 = vrot.slane %v1455, 4
    %v1457 = vadd.f32 %v1455, %v1456
    %v1458 = vrot.slane %v1457, 2
    %v1459 = vadd.f32 %v1457, %v1458
    %v1460 = vrot.slane %v1459, 1
    %v1461 = vadd.f32 %v1459, %v1460
    %v1462 = vadd.f32 %v1448, %v1450
    %v1463 = vrot.slane %v1462, 4
    %v1464 = vadd.f32 %v1462, %v1463
    %v1465 = vrot.slane %v1464, 2
    %v1466 = vadd.f32 %v1464, %v1465
    %v1467 = vrot.slane %v1466, 1
    %v1468 = vadd.f32 %v1466, %v1467
    %v1469 = vadd.f32 %v1451, %v1453
    %v1470 = vrot.slane %v1469, 4
    %v1471 = vadd.f32 %v1469, %v1470
    %v1472 = vrot.slane %v1471, 2
    %v1473 = vadd.f32 %v1471, %v1472
    %v1474 = vrot.slane %v1473, 1
    %v1475 = vadd.f32 %v1473, %v1474
    %v1476 = vadd.f32 %v1452, %v1454
    %v1477 = vrot.slane %v1476, 4
    %v1478 = vadd.f32 %v1476, %v1477
    %v1479 = vrot.slane %v1478, 2
    %v1480 = vadd.f32 %v1478, %v1479
    %v1481 = vrot.slane %v1480, 1
    %v1482 = vadd.f32 %v1480, %v1481
    %v1483 = vpack.c.bf16 %v1461, %v1461
    %v1484 = vpack.c.bf16 %v1468, %v1468
    %v1485 = vpack.c.bf16 %v1475, %v1475
    %v1486 = vpack.c.bf16 %v1482, %v1482
    %v1487 = vld [vmem:[%s5] sm:$0xf]
    %v1488 = vld [vmem:[%s5 + $0x4] sm:$0xf]
    %v1489 = vld [vmem:[%s5 + $0x8] sm:$0xf]
    %v1490 = vld [vmem:[%s5 + $0xc] sm:$0xf]
    %v1491 = vld [vmem:[%s5 + $0x10] sm:$0xf]
    %v1492 = vld [vmem:[%s5 + $0x14] sm:$0xf]
    %v1493 = vld [vmem:[%s5 + $0x18] sm:$0xf]
    %v1494 = vld [vmem:[%s5 + $0x1c] sm:$0xf]
    %v1495 = vld [vmem:[%s5 + $0x20] sm:$0xf]
    %v1496 = vld [vmem:[%s5 + $0x24] sm:$0xf]
    %v1497 = vld [vmem:[%s5 + $0x28] sm:$0xf]
    %v1498 = vld [vmem:[%s5 + $0x2c] sm:$0xf]
    %v1499 = vld [vmem:[%s5 + $0x30] sm:$0xf]
    %v1500 = vld [vmem:[%s5 + $0x34] sm:$0xf]
    %v1501 = vld [vmem:[%s5 + $0x38] sm:$0xf]
    %v1502 = vld [vmem:[%s5 + $0x3c] sm:$0xf]
    %v1503 = vld [vmem:[%s5 + $0x40] sm:$0xf]
    %v1504 = vld [vmem:[%s5 + $0x44] sm:$0xf]
    %v1505 = vld [vmem:[%s5 + $0x48] sm:$0xf]
    %v1506 = vld [vmem:[%s5 + $0x4c] sm:$0xf]
    %v1507 = vld [vmem:[%s5 + $0x50] sm:$0xf]
    %v1508 = vld [vmem:[%s5 + $0x54] sm:$0xf]
    %v1509 = vld [vmem:[%s5 + $0x58] sm:$0xf]
    %v1510 = vld [vmem:[%s5 + $0x5c] sm:$0xf]
    %v1511 = vld [vmem:[%s5 + $0x60] sm:$0xf]
    %v1512 = vld [vmem:[%s5 + $0x64] sm:$0xf]
    %v1513 = vld [vmem:[%s5 + $0x68] sm:$0xf]
    %v1514 = vld [vmem:[%s5 + $0x6c] sm:$0xf]
    %v1515 = vld [vmem:[%s5 + $0x70] sm:$0xf]
    %v1516 = vld [vmem:[%s5 + $0x74] sm:$0xf]
    %v1517 = vld [vmem:[%s5 + $0x78] sm:$0xf]
    %v1518 = vld [vmem:[%s5 + $0x7c] sm:$0xf]
    %v1519 = vld [vmem:[%s6] sm:$0x1]
    %v1521 = vlaneseq
    %v1522 = vshrl.u32 %v1521, 7
    %v1523 = vsub.s32 0, %v1522
    %v1524 = vrot.slane %v1519, %v1523
    %v1530 = vunpack.c.l.b16 %v1483
    %v1531 = vunpack.c.l.b16 %v1484
    %v1532 = vunpack.c.l.b16 %v1485
    %v1533 = vunpack.c.l.b16 %v1486
    %vm1534 = vcmask 1041409
    %v1535 = vsel %vm1534, %v1532, %v1530
    %v1536 = vsel %vm1534, %v1533, %v1531
    %v1537 = vpack.c.b16 %v1535, %v1535
    %v1538 = vpack.c.b16 %v1536, %v1536
    %v1573 = vunpack.c.l.b16 %v1487
    %v1574 = vunpack.c.l.b16 %v1488
    %v1575 = vunpack.c.l.b16 %v1489
    %v1576 = vunpack.c.l.b16 %v1490
    %v1577 = vunpack.c.l.b16 %v1491
    %v1578 = vunpack.c.l.b16 %v1492
    %v1579 = vunpack.c.l.b16 %v1493
    %v1580 = vunpack.c.l.b16 %v1494
    %v1581 = vunpack.c.l.b16 %v1495
    %v1582 = vunpack.c.l.b16 %v1496
    %v1583 = vunpack.c.l.b16 %v1497
    %v1584 = vunpack.c.l.b16 %v1498
    %v1585 = vunpack.c.l.b16 %v1499
    %v1586 = vunpack.c.l.b16 %v1500
    %v1587 = vunpack.c.l.b16 %v1501
    %v1588 = vunpack.c.l.b16 %v1502
    %v1589 = vunpack.c.l.b16 %v1503
    %v1590 = vunpack.c.l.b16 %v1504
    %v1591 = vunpack.c.l.b16 %v1505
    %v1592 = vunpack.c.l.b16 %v1506
    %v1593 = vunpack.c.l.b16 %v1507
    %v1594 = vunpack.c.l.b16 %v1508
    %v1595 = vunpack.c.l.b16 %v1509
    %v1596 = vunpack.c.l.b16 %v1510
    %v1597 = vunpack.c.l.b16 %v1511
    %v1598 = vunpack.c.l.b16 %v1512
    %v1599 = vunpack.c.l.b16 %v1513
    %v1600 = vunpack.c.l.b16 %v1514
    %v1601 = vunpack.c.l.b16 %v1515
    %v1602 = vunpack.c.l.b16 %v1516
    %v1603 = vunpack.c.l.b16 %v1517
    %v1604 = vunpack.c.l.b16 %v1518
    %v1605 = vpack.c.b16 %v1574, %v1573
    %v1606 = vpack.c.b16 %v1576, %v1575
    %v1607 = vpack.c.b16 %v1578, %v1577
    %v1608 = vpack.c.b16 %v1580, %v1579
    %v1609 = vpack.c.b16 %v1582, %v1581
    %v1610 = vpack.c.b16 %v1584, %v1583
    %v1611 = vpack.c.b16 %v1586, %v1585
    %v1612 = vpack.c.b16 %v1588, %v1587
    %v1613 = vpack.c.b16 %v1590, %v1589
    %v1614 = vpack.c.b16 %v1592, %v1591
    %v1615 = vpack.c.b16 %v1594, %v1593
    %v1616 = vpack.c.b16 %v1596, %v1595
    %v1617 = vpack.c.b16 %v1598, %v1597
    %v1618 = vpack.c.b16 %v1600, %v1599
    %v1619 = vpack.c.b16 %v1602, %v1601
    %v1620 = vpack.c.b16 %v1604, %v1603
    %1637 = vmatprep.subr.bf16.mxu0 0
    %1638 = vmatpush1.bf16.msra.mxu0 %v1605
    %1639 = vmatprep.subr.bf16.mxu0 0
    %1640 = vmatpush1.bf16.msra.mxu0 %v1606
    %1641 = vmatprep.subr.bf16.mxu0 0
    %1642 = vmatpush1.bf16.msra.mxu0 %v1607
    %1643 = vmatprep.subr.bf16.mxu0 0
    %1644 = vmatpush1.bf16.msra.mxu0 %v1608
    %1645 = vmatprep.subr.bf16.mxu0 0
    %1646 = vmatpush1.bf16.msra.mxu0 %v1609
    %1647 = vmatprep.subr.bf16.mxu0 0
    %1648 = vmatpush1.bf16.msra.mxu0 %v1610
    %1649 = vmatprep.subr.bf16.mxu0 0
    %1650 = vmatpush1.bf16.msra.mxu0 %v1611
    %1651 = vmatprep.subr.bf16.mxu0 0
    %1652 = vmatpush1.bf16.msra.mxu0 %v1612
    %1653 = vmatprep.subr.bf16.mxu0 0
    %1654 = vmatpush1.bf16.msra.mxu0 %v1613
    %1655 = vmatprep.subr.bf16.mxu0 0
    %1656 = vmatpush1.bf16.msra.mxu0 %v1614
    %1657 = vmatprep.subr.bf16.mxu0 0
    %1658 = vmatpush1.bf16.msra.mxu0 %v1615
    %1659 = vmatprep.subr.bf16.mxu0 0
    %1660 = vmatpush1.bf16.msra.mxu0 %v1616
    %1661 = vmatprep.subr.bf16.mxu0 0
    %1662 = vmatpush1.bf16.msra.mxu0 %v1617
    %1663 = vmatprep.subr.bf16.mxu0 0
    %1664 = vmatpush1.bf16.msra.mxu0 %v1618
    %1665 = vmatprep.subr.bf16.mxu0 0
    %1666 = vmatpush1.bf16.msra.mxu0 %v1619
    %1667 = vmatprep.subr.bf16.mxu0 0
    %1668 = vmatpush1.bf16.msra.mxu0 %v1620
    %1669 = vmatprep.mubr.bf16.mxu0 %v1538
    %1670 = vmatmul.mubr.bf16.gmra.mrb[0].mxu0 %v1537
    %v1671 = vpop.f32.mrb[0].mxu0
    %v1672 = vadd.f32 %v1524, %v1671
    %v1673 = vpop.f32.mrb[0].mxu0
    %v1674 = vpop.f32.mrb[0].mxu0
    %v1675 = vpop.f32.mrb[0].mxu0
    %1676 = vdwg.mxu0
    %1677 = vst [vmem:[#allocation2] sm:$0x3] %v1672
    // Predicated region
    $region30: #{forward.1} parent=1 // pred_check
      _
    $region31: #{forward.1} parent=1 // pred_check_branch
      %1679 = sbr.rel (0) target = $region33
    $region32: #{forward.1} parent=1 // pred_region
      %s1681 = ssub.s32 32, 32
      %1682 = vsyncadd [#allocation3], %s1681
      %s1684 = sshll.u32 [#allocation2], 4
      %s1685 = int_to_ptr.vmem [resolvable:$true] %s1684
      %1687 = dma.vmem_to_hbm [thread:$0]  %s1685, 32, %s7, [#allocation3]
    $region33: #{forward.1} parent=1 // pred_fallthru
      _
    // Predicated region
    $region34: #{forward.1} parent=1 // pred_check
      _
    $region35: #{forward.1} parent=1 // pred_check_branch
      %1689 = sbr.rel (0) target = $region37
    $region36: #{forward.1} parent=1 // pred_region
      %1690 = dma.done [#allocation3], 32
    $region37: #{forward.1} parent=1 // pred_fallthru
      _
    %1691 = vsyncpa [#allocation3], 1

</llo_original>
